<compile_context>
chip_gen: v5e
topology: v5e:2x2
jax: 0.10.0
libtpu: 0.0.40
codegen_flags: <defaults>
</compile_context>

<pallas_src>
import functools

import numpy as np
import jax
import jax.numpy as jnp
from jax.experimental import pallas as pl
from jax.experimental.pallas import tpu as pltpu


# ----------------------------------------------------------------------------
# Class-tree construction (replicates FeatureANN.__init__ parsing, in memory —
# no file reads).  Each "line" is a path root-level ... leaf.
# ----------------------------------------------------------------------------
TREE_LINES = [
    (0, 0, 0), (0, 0, 1), (0, 1, 2), (0, 1, 3),
    (1, 2, 4), (1, 2, 5), (1, 3, 6), (1, 3, 7),
]


def build_tree(tree_lines):
    n_bin = 0
    bins, bin_uniques, i_bins = [], [], []
    for nodes in tree_lines:
        n_node = len(nodes)
        if bins == []:
            for _ in range(1, n_node):
                bins.append([])
                bin_uniques.append([])
                i_bins.append({})
                n_bin += 1
            bin_uniques.append([])
        for i in range(1, n_node):
            bins[i - 1].append([nodes[i - 1], nodes[i]])
            if nodes[i - 1] not in bin_uniques[i - 1]:
                bin_uniques[i - 1].append(nodes[i - 1])
            if nodes[i] not in i_bins[i - 1]:
                i_bins[i - 1][nodes[i]] = []
            i_bins[i - 1][nodes[i]].append(nodes[-1])
        if nodes[-1] not in bin_uniques[-1]:
            bin_uniques[-1].append(nodes[-1])
    return n_bin, bins, bin_uniques, i_bins


def build_projections(tree_lines, n_bin, bin_uniques):
    """P_i[parent_idx_at_level_i, leaf_idx] = 1 iff leaf descends from parent."""
    n_leaf = len(bin_uniques[-1])
    projs = []
    for i in range(n_bin):
        p = np.zeros((len(bin_uniques[i]), n_leaf), dtype=np.float32)
        for nodes in tree_lines:
            parent_idx = bin_uniques[i].index(nodes[i])
            leaf_idx = bin_uniques[-1].index(nodes[-1])
            p[parent_idx, leaf_idx] = 1.0
        projs.append(p)
    projs.append(np.eye(n_leaf, dtype=np.float32))  # final head: identity
    return projs


# ----------------------------------------------------------------------------
# Fused Pallas kernel (one grid step per batch tile).  All heads are packed
# into one 128-lane block (total real classes 2+4+8+8 = 22 <= 128).
#   logits = x @ W_all + b_all            (1 MXU pass; padded lanes biased -1e30)
#   probs  = segment-wise softmax(logits) (2-D only: masked maxes + e@seg.T)
#   aux    = probs                        (packed per-level softmaxes, lane-dense)
#   proj   = probs_bf16 @ P_blockdiag     (1 bf16 MXU pass -> (bt, L*128))
#   y_     = prod_l proj[:, l*128:(l+1)*128]
# ----------------------------------------------------------------------------
def feature_ann_kernel(x_ref, w_ref, b_ref, seg_ref, segt_ref, p_ref,
                       y_ref, aux_ref, *, n_levels):
    logits = jnp.dot(x_ref[...], w_ref[...],
                     preferred_element_type=jnp.float32) + b_ref[...]   # (bt, C)

    seg = seg_ref[...]                        # (L, C) 0/1 membership, f32
    neg = (seg - 1.0) * 1e30                  # 0 on own segment, -1e30 elsewhere

    # Per-segment row maxes, kept strictly 2-D (no (L, bt, C) expansion).
    maxmap = jnp.zeros_like(logits)
    for l in range(n_levels):
        m_l = jnp.max(logits + neg[l:l + 1, :], axis=-1, keepdims=True)  # (bt, 1)
        maxmap = maxmap + m_l * seg[l:l + 1, :]                          # (bt, C)

    e = jnp.exp(logits - maxmap)              # (bt, C); masked lanes underflow to 0

    # Segment denominators via two tiny MXU matmuls.
    sums = jnp.dot(e, segt_ref[...], preferred_element_type=jnp.float32)  # (bt, L)
    inv = pl.reciprocal(sums, approx=True)    # EUP slot (otherwise idle)
    inv = inv * (2.0 - sums * inv)            # one Newton step -> ~f32 accuracy
    denom = jnp.dot(inv, seg, preferred_element_type=jnp.float32)         # (bt, C)

    probs = e * denom                         # packed per-level softmaxes (f32)
    aux_ref[...] = probs.astype(aux_ref.dtype)

    # One bf16 x bf16 MXU pass against the block-diagonal projection matrix.
    proj = jnp.dot(probs.astype(p_ref.dtype), p_ref[...],
                   preferred_element_type=jnp.float32)                    # (bt, L*K)

    k = p_ref.shape[1] // n_levels            # 128, lane-aligned blocks
    y = proj[:, 0:k]
    for l in range(1, n_levels):
        y = y * proj[:, l * k:(l + 1) * k]
    y_ref[...] = y.astype(y_ref.dtype)


def feature_ann_forward(x, w_all, b_all, seg, seg_t, p_packed,
                        *, n_levels, batch_tile=None):
    B, Dp = x.shape
    C = w_all.shape[1]
    LK = p_packed.shape[1]
    K = LK // n_levels

    if batch_tile is None:
        # >= 256 rows feeds a full MXU M pass and keeps >= 2 grid steps for
        # v7x's two TensorCores at production batch sizes.
        batch_tile = 256 if (B % 256 == 0 and B >= 512) else B
    assert B % batch_tile == 0 and batch_tile % 8 == 0
    grid = (B // batch_tile,)

    kernel = functools.partial(feature_ann_kernel, n_levels=n_levels)

    out_shape = (
        jax.ShapeDtypeStruct((B, K), jnp.float32),   # y_ (product over levels)
        jax.ShapeDtypeStruct((B, C), jnp.float32),   # packed per-level softmaxes
    )
    # NOTE: switch the two dtypes above to jnp.bfloat16 to halve the HBM write
    # stream (the dominant traffic) if downstream consumers tolerate bf16.

    return pl.pallas_call(
        kernel,
        out_shape=out_shape,
        grid=grid,
        in_specs=[
            pl.BlockSpec((batch_tile, Dp), lambda i: (i, 0)),   # x tile (lane-dense)
            pl.BlockSpec((Dp, C), lambda i: (0, 0)),            # packed W
            pl.BlockSpec((1, C), lambda i: (0, 0)),             # packed bias (+mask fold)
            pl.BlockSpec((n_levels, C), lambda i: (0, 0)),      # segment one-hot
            pl.BlockSpec((C, n_levels), lambda i: (0, 0)),      # segment one-hot, transposed
            pl.BlockSpec((C, LK), lambda i: (0, 0)),            # block-diagonal projection (bf16)
        ],
        out_specs=(
            pl.BlockSpec((batch_tile, K), lambda i: (i, 0)),    # y_
            pl.BlockSpec((batch_tile, C), lambda i: (i, 0)),    # packed aux
        ),
        compiler_params=pltpu.CompilerParams(
            dimension_semantics=("parallel",),
            vmem_limit_bytes=32 * 1024 * 1024,      # explicit cap: safe on v7x's 64 MiB VMEM
        ),
    )(x, w_all, b_all, seg, seg_t, p_packed)


# ----------------------------------------------------------------------------
# Pure-JAX reference (mirrors the PyTorch forward, with_aux=True)
# ----------------------------------------------------------------------------
def ref_forward(x, weights, biases, projs):
    y_list = []
    y_ = None
    n_bin = len(weights) - 1
    for i in range(n_bin):
        prob = jax.nn.softmax(x @ weights[i] + biases[i], axis=1)
        y_list.append(prob)
        proj = prob @ projs[i]
        y_ = proj if y_ is None else y_ * proj
    b_y = jax.nn.softmax(x @ weights[-1] + biases[-1], axis=1)
    y_list.append(b_y)
    y_ = y_ * b_y
    return y_, y_list


if __name__ == "__main__":
    B, D = 512, 32          # B=512 with batch_tile=256 -> grid=(2,), both v7x TCs busy
    LANE = 128

    n_bin, bins, bin_uniques, i_bins = build_tree(TREE_LINES)
    head_dims = [len(bin_uniques[i]) for i in range(n_bin)] + [len(bin_uniques[-1])]
    n_leaf = len(bin_uniques[-1])
    L = n_bin + 1
    offs = np.concatenate([[0], np.cumsum(head_dims)]).astype(np.int64)
    n_class_total = int(offs[-1])
    assert n_class_total <= LANE, "packed-head layout requires total classes <= 128"

    projs_np = build_projections(TREE_LINES, n_bin, bin_uniques)

    # Deterministic parameter init (PyTorch-Linear-style uniform bounds)
    key = jax.random.PRNGKey(0)
    keys = jax.random.split(key, 2 * L + 1)
    bound = 1.0 / np.sqrt(D)
    weights = []   # (D, out_i), i.e. W^T of torch Linear
    biases = []
    for i in range(L):
        w = jax.random.uniform(keys[2 * i], (D, head_dims[i]),
                               minval=-bound, maxval=bound, dtype=jnp.float32)
        b = jax.random.uniform(keys[2 * i + 1], (head_dims[i],),
                               minval=-bound, maxval=bound, dtype=jnp.float32)
        weights.append(w)
        biases.append(b)

    x = jax.random.normal(keys[-1], (B, D), dtype=jnp.float32)

    # ---- Host-side packing ----
    C = LANE                                    # packed class lanes
    K = LANE                                    # packed leaf lanes per level
    Dp = ((D + LANE - 1) // LANE) * LANE        # zero-pad feature dim -> lane-dense x

    x_pad = np.zeros((B, Dp), dtype=np.float32)
    x_pad[:, :D] = np.asarray(x)

    w_all = np.zeros((Dp, C), dtype=np.float32)
    b_all = np.full((1, C), -1e30, dtype=np.float32)   # class-validity mask folded into bias
    seg = np.zeros((L, C), dtype=np.float32)           # segment membership one-hot
    p_packed = np.zeros((C, L * K), dtype=np.float32)  # block-diagonal projections
    for i in range(L):
        c0, c1 = int(offs[i]), int(offs[i + 1])
        w_all[:D, c0:c1] = np.asarray(weights[i])
        b_all[0, c0:c1] = np.asarray(biases[i])
        seg[i, c0:c1] = 1.0
        p_packed[c0:c1, i * K:i * K + n_leaf] = projs_np[i]
    seg_t = np.ascontiguousarray(seg.T)

    y_pad, aux_pad = feature_ann_forward(
        jnp.asarray(x_pad),
        jnp.asarray(w_all),
        jnp.asarray(b_all),
        jnp.asarray(seg),
        jnp.asarray(seg_t),
        jnp.asarray(p_packed, dtype=jnp.bfloat16),   # 0/1 values: exact in bf16
        n_levels=L,
        batch_tile=256,
    )
    jax.block_until_ready((y_pad, aux_pad))

    # Unpack kernel outputs
    y_ = np.asarray(y_pad)[:, :n_leaf]
    aux_np = np.asarray(aux_pad)
    y_aux = [aux_np[:, int(offs[i]):int(offs[i + 1])] for i in range(L)]

    # Verify against the pure-JAX reference of the PyTorch forward.
    y_ref, y_list_ref = ref_forward(x, weights, biases,
                                    [jnp.asarray(p) for p in projs_np])
    # aux stays f32 end-to-end (approx-recip + Newton ~ f32 accurate): tight check.
    for a, r in zip(y_aux, y_list_ref):
        assert np.allclose(a, np.asarray(r), atol=1e-5, rtol=1e-4)
    # y_ goes through a bf16 MXU pass on probs: looser relative tolerance.
    assert np.allclose(y_, np.asarray(y_ref), atol=1e-6, rtol=3e-2)

    print("KERNEL_OK")
</pallas_src>

<mosaic_0001>
module attributes {stable_mosaic.version = 11 : i64} {
  func.func @feature_ann_kernel(%arg0: i32, %arg1: memref<256x128xf32, #tpu.memory_space<vmem>>, %arg2: memref<128x128xf32, #tpu.memory_space<vmem>>, %arg3: memref<1x128xf32, #tpu.memory_space<vmem>>, %arg4: memref<3x128xf32, #tpu.memory_space<vmem>>, %arg5: memref<128x3xf32, #tpu.memory_space<vmem>>, %arg6: memref<128x384xbf16, #tpu.memory_space<vmem>>, %arg7: memref<256x128xf32, #tpu.memory_space<vmem>>, %arg8: memref<256x128xf32, #tpu.memory_space<vmem>>) attributes {dimension_semantics = [#tpu.dimension_semantics<parallel>], iteration_bounds = array<i64: 2>, scalar_prefetch = 0 : i64, scratch_operands = 0 : i64, tpu.core_type = #tpu.core_type<tc>, window_params = [{transform_indices = @transform_0, window_bounds = array<i64: 256, 128>}, {pipeline_mode = #tpu.pipeline_mode<synchronous>, transform_indices = @transform_1, window_bounds = array<i64: 128, 128>}, {pipeline_mode = #tpu.pipeline_mode<synchronous>, transform_indices = @transform_2, window_bounds = array<i64: 1, 128>}, {pipeline_mode = #tpu.pipeline_mode<synchronous>, transform_indices = @transform_3, window_bounds = array<i64: 3, 128>}, {pipeline_mode = #tpu.pipeline_mode<synchronous>, transform_indices = @transform_4, window_bounds = array<i64: 128, 3>}, {pipeline_mode = #tpu.pipeline_mode<synchronous>, transform_indices = @transform_5, window_bounds = array<i64: 128, 384>}, {transform_indices = @transform_6, window_bounds = array<i64: 256, 128>}, {transform_indices = @transform_7, window_bounds = array<i64: 256, 128>}]} {
    %c0 = arith.constant 0 : index
    %c0_0 = arith.constant 0 : index
    %0 = vector.load %arg1[%c0, %c0_0] : memref<256x128xf32, #tpu.memory_space<vmem>>, vector<256x128xf32>
    %c0_1 = arith.constant 0 : index
    %c0_2 = arith.constant 0 : index
    %1 = vector.load %arg2[%c0_1, %c0_2] : memref<128x128xf32, #tpu.memory_space<vmem>>, vector<128x128xf32>
    %cst = arith.constant dense<0.000000e+00> : vector<256x128xf32>
    %2 = tpu.matmul %0, %1, %cst {dimension_numbers = #tpu.dot_dimension_numbers<[1], [0], [0], [1], [0, 0, 1, 1], [], []>} : vector<256x128xf32>, vector<128x128xf32>, vector<256x128xf32> -> vector<256x128xf32>
    %c0_3 = arith.constant 0 : index
    %c0_4 = arith.constant 0 : index
    %3 = vector.load %arg3[%c0_3, %c0_4] : memref<1x128xf32, #tpu.memory_space<vmem>>, vector<1x128xf32>
    %4 = vector.broadcast %3 : vector<1x128xf32> to vector<256x128xf32>
    %5 = arith.addf %2, %4 : vector<256x128xf32>
    %c0_5 = arith.constant 0 : index
    %c0_6 = arith.constant 0 : index
    %6 = vector.load %arg4[%c0_5, %c0_6] : memref<3x128xf32, #tpu.memory_space<vmem>>, vector<3x128xf32>
    %cst_7 = arith.constant 1.000000e+00 : f32
    %7 = vector.broadcast %cst_7 : f32 to vector<3x128xf32>
    %8 = arith.subf %6, %7 : vector<3x128xf32>
    %cst_8 = arith.constant 1.000000e+30 : f32
    %9 = vector.broadcast %cst_8 : f32 to vector<3x128xf32>
    %10 = arith.mulf %8, %9 : vector<3x128xf32>
    %cst_9 = arith.constant 0.000000e+00 : f32
    %11 = vector.broadcast %cst_9 : f32 to vector<256x128xf32>
    %12 = vector.extract_strided_slice %10 {offsets = [0, 0], sizes = [1, 128], strides = [1, 1]} : vector<3x128xf32> to vector<1x128xf32>
    %13 = vector.broadcast %12 : vector<1x128xf32> to vector<256x128xf32>
    %14 = arith.addf %5, %13 : vector<256x128xf32>
    %cst_10 = arith.constant dense<0xFF800000> : vector<256xf32>
    %15 = vector.multi_reduction <maximumf>, %14, %cst_10 [1] : vector<256x128xf32> to vector<256xf32>
    %16 = vector.shape_cast %15 : vector<256xf32> to vector<256x1xf32>
    %17 = vector.extract_strided_slice %6 {offsets = [0, 0], sizes = [1, 128], strides = [1, 1]} : vector<3x128xf32> to vector<1x128xf32>
    %18 = vector.broadcast %16 : vector<256x1xf32> to vector<256x128xf32>
    %19 = vector.broadcast %17 : vector<1x128xf32> to vector<256x128xf32>
    %20 = arith.mulf %18, %19 : vector<256x128xf32>
    %21 = arith.addf %11, %20 : vector<256x128xf32>
    %22 = vector.extract_strided_slice %10 {offsets = [1, 0], sizes = [1, 128], strides = [1, 1]} : vector<3x128xf32> to vector<1x128xf32>
    %23 = vector.broadcast %22 : vector<1x128xf32> to vector<256x128xf32>
    %24 = arith.addf %5, %23 : vector<256x128xf32>
    %cst_11 = arith.constant dense<0xFF800000> : vector<256xf32>
    %25 = vector.multi_reduction <maximumf>, %24, %cst_11 [1] : vector<256x128xf32> to vector<256xf32>
    %26 = vector.shape_cast %25 : vector<256xf32> to vector<256x1xf32>
    %27 = vector.extract_strided_slice %6 {offsets = [1, 0], sizes = [1, 128], strides = [1, 1]} : vector<3x128xf32> to vector<1x128xf32>
    %28 = vector.broadcast %26 : vector<256x1xf32> to vector<256x128xf32>
    %29 = vector.broadcast %27 : vector<1x128xf32> to vector<256x128xf32>
    %30 = arith.mulf %28, %29 : vector<256x128xf32>
    %31 = arith.addf %21, %30 : vector<256x128xf32>
    %32 = vector.extract_strided_slice %10 {offsets = [2, 0], sizes = [1, 128], strides = [1, 1]} : vector<3x128xf32> to vector<1x128xf32>
    %33 = vector.broadcast %32 : vector<1x128xf32> to vector<256x128xf32>
    %34 = arith.addf %5, %33 : vector<256x128xf32>
    %cst_12 = arith.constant dense<0xFF800000> : vector<256xf32>
    %35 = vector.multi_reduction <maximumf>, %34, %cst_12 [1] : vector<256x128xf32> to vector<256xf32>
    %36 = vector.shape_cast %35 : vector<256xf32> to vector<256x1xf32>
    %37 = vector.extract_strided_slice %6 {offsets = [2, 0], sizes = [1, 128], strides = [1, 1]} : vector<3x128xf32> to vector<1x128xf32>
    %38 = vector.broadcast %36 : vector<256x1xf32> to vector<256x128xf32>
    %39 = vector.broadcast %37 : vector<1x128xf32> to vector<256x128xf32>
    %40 = arith.mulf %38, %39 : vector<256x128xf32>
    %41 = arith.addf %31, %40 : vector<256x128xf32>
    %42 = arith.subf %5, %41 : vector<256x128xf32>
    %43 = math.exp %42 : vector<256x128xf32>
    %c0_13 = arith.constant 0 : index
    %c0_14 = arith.constant 0 : index
    %44 = vector.load %arg5[%c0_13, %c0_14] : memref<128x3xf32, #tpu.memory_space<vmem>>, vector<128x3xf32>
    %cst_15 = arith.constant dense<0.000000e+00> : vector<256x3xf32>
    %45 = tpu.matmul %43, %44, %cst_15 {dimension_numbers = #tpu.dot_dimension_numbers<[1], [0], [0], [1], [0, 0, 1, 1], [], []>} : vector<256x128xf32>, vector<128x3xf32>, vector<256x3xf32> -> vector<256x3xf32>
    %46 = tpu.reciprocal %45 {approx = true} : vector<256x3xf32> -> vector<256x3xf32>
    %47 = arith.mulf %45, %46 : vector<256x3xf32>
    %cst_16 = arith.constant 2.000000e+00 : f32
    %48 = vector.broadcast %cst_16 : f32 to vector<256x3xf32>
    %49 = arith.subf %48, %47 : vector<256x3xf32>
    %50 = arith.mulf %46, %49 : vector<256x3xf32>
    %cst_17 = arith.constant dense<0.000000e+00> : vector<256x128xf32>
    %51 = tpu.matmul %50, %6, %cst_17 {dimension_numbers = #tpu.dot_dimension_numbers<[1], [0], [0], [1], [0, 0, 1, 1], [], []>} : vector<256x3xf32>, vector<3x128xf32>, vector<256x128xf32> -> vector<256x128xf32>
    %52 = arith.mulf %43, %51 : vector<256x128xf32>
    %c0_18 = arith.constant 0 : index
    %c0_19 = arith.constant 0 : index
    %53 = vector.load %arg8[%c0_18, %c0_19] : memref<256x128xf32, #tpu.memory_space<vmem>>, vector<256x128xf32>
    tpu.vector_store %arg8[%c0_18, %c0_19], %52 {strides = array<i32>} : memref<256x128xf32, #tpu.memory_space<vmem>>, vector<256x128xf32>,
    %54 = arith.truncf %52 : vector<256x128xf32> to vector<256x128xbf16>
    %c0_20 = arith.constant 0 : index
    %c0_21 = arith.constant 0 : index
    %55 = vector.load %arg6[%c0_20, %c0_21] : memref<128x384xbf16, #tpu.memory_space<vmem>>, vector<128x384xbf16>
    %cst_22 = arith.constant dense<0.000000e+00> : vector<256x384xf32>
    %56 = tpu.matmul %54, %55, %cst_22 {dimension_numbers = #tpu.dot_dimension_numbers<[1], [0], [0], [1], [0, 0, 1, 1], [], []>} : vector<256x128xbf16>, vector<128x384xbf16>, vector<256x384xf32> -> vector<256x384xf32>
    %57 = vector.extract_strided_slice %56 {offsets = [0, 0], sizes = [256, 128], strides = [1, 1]} : vector<256x384xf32> to vector<256x128xf32>
    %58 = vector.extract_strided_slice %56 {offsets = [0, 128], sizes = [256, 128], strides = [1, 1]} : vector<256x384xf32> to vector<256x128xf32>
    %59 = arith.mulf %57, %58 : vector<256x128xf32>
    %60 = vector.extract_strided_slice %56 {offsets = [0, 256], sizes = [256, 128], strides = [1, 1]} : vector<256x384xf32> to vector<256x128xf32>
    %61 = arith.mulf %59, %60 : vector<256x128xf32>
    %c0_23 = arith.constant 0 : index
    %c0_24 = arith.constant 0 : index
    %62 = vector.load %arg7[%c0_23, %c0_24] : memref<256x128xf32, #tpu.memory_space<vmem>>, vector<256x128xf32>
    tpu.vector_store %arg7[%c0_23, %c0_24], %61 {strides = array<i32>} : memref<256x128xf32, #tpu.memory_space<vmem>>, vector<256x128xf32>,
    return
  }
  func.func @transform_0(%arg0: i32) -> (i32, i32) {
    %c0_i32 = arith.constant 0 : i32
    %c0_i32_0 = arith.constant 0 : i32
    return %arg0, %c0_i32 : i32, i32
  }
  func.func @transform_1(%arg0: i32) -> (i32, i32) {
    %c0_i32 = arith.constant 0 : i32
    %c0_i32_0 = arith.constant 0 : i32
    %c0_i32_1 = arith.constant 0 : i32
    return %c0_i32, %c0_i32_0 : i32, i32
  }
  func.func @transform_2(%arg0: i32) -> (i32, i32) {
    %c0_i32 = arith.constant 0 : i32
    %c0_i32_0 = arith.constant 0 : i32
    %c0_i32_1 = arith.constant 0 : i32
    return %c0_i32, %c0_i32_0 : i32, i32
  }
  func.func @transform_3(%arg0: i32) -> (i32, i32) {
    %c0_i32 = arith.constant 0 : i32
    %c0_i32_0 = arith.constant 0 : i32
    %c0_i32_1 = arith.constant 0 : i32
    return %c0_i32, %c0_i32_0 : i32, i32
  }
  func.func @transform_4(%arg0: i32) -> (i32, i32) {
    %c0_i32 = arith.constant 0 : i32
    %c0_i32_0 = arith.constant 0 : i32
    %c0_i32_1 = arith.constant 0 : i32
    return %c0_i32, %c0_i32_0 : i32, i32
  }
  func.func @transform_5(%arg0: i32) -> (i32, i32) {
    %c0_i32 = arith.constant 0 : i32
    %c0_i32_0 = arith.constant 0 : i32
    %c0_i32_1 = arith.constant 0 : i32
    return %c0_i32, %c0_i32_0 : i32, i32
  }
  func.func @transform_6(%arg0: i32) -> (i32, i32) {
    %c0_i32 = arith.constant 0 : i32
    %c0_i32_0 = arith.constant 0 : i32
    return %arg0, %c0_i32 : i32, i32
  }
  func.func @transform_7(%arg0: i32) -> (i32, i32) {
    %c0_i32 = arith.constant 0 : i32
    %c0_i32_0 = arith.constant 0 : i32
    return %arg0, %c0_i32 : i32, i32
  }
}

</mosaic_0001>

<llo_original>
// kernel: tpu_custom_call.1
$region0: #{tpu_custom_call.1}
  #allocation0 [shape = 'u32[]', space=smem, size = 0x4, offset = 0x4, fixed_abs, tag = 'smem constant byte address 0x4 - core index']
  #allocation1 [shape = 'u32[72,128]{1,0:T(1,128)}', space=vmem, size = 0x9000, scoped, tag = 'internal scratch']
  %s0 = inlined_call_operand.hbm [shape: f32[512,128], index: 0, kind: input, shape index: {}]
  %s1 = inlined_call_operand.vmem [shape: f32[128,128], index: 1, kind: input, shape index: {}]
  %s2 = inlined_call_operand.vmem [shape: f32[1,128], index: 2, kind: input, shape index: {}]
  %s3 = inlined_call_operand.vmem [shape: f32[3,128], index: 3, kind: input, shape index: {}]
  %s4 = inlined_call_operand.vmem [shape: f32[128,3], index: 4, kind: input, shape index: {}]
  %s5 = inlined_call_operand.hbm [shape: bf16[128,384], index: 5, kind: input, shape index: {}]
  %s6 = inlined_call_operand.hbm [shape: f32[512,128], index: 6, kind: output, shape index: {0}]
  %s7 = inlined_call_operand.hbm [shape: f32[512,128], index: 7, kind: output, shape index: {1}]
  %8 = xla_tuple %s6, %s7
  %s9 = sld [smem:[#allocation0]]
  $region73: #{tpu_custom_call.1} parent=0
    _
  %s11 = ssub.s32 1, %s9
  %s12 = scalar_select 0, %s11, %s9
  $region1: #{tpu_custom_call.1} parent=0
    #allocation2 [shape = 'u8[262144]{0}', space=vmem, size = 0x40000, scoped, tag = 'input window, operand 0']
    #allocation3 [shape = 's32[2]{0}', space=sflag, size = 0x8, scoped, tag = 'scoped memory for tpu_custom_call.1']
    #allocation4 [shape = 's32[2]{0}', space=sflag, size = 0x8, scoped, tag = 'scoped memory for tpu_custom_call.1']
    #allocation5 [shape = 'u8[98304]{0}', space=vmem, size = 0x18000, scoped, tag = 'input window, operand 5, single buffered']
    #allocation6 [shape = 's32[1]{0}', space=sflag, size = 0x4, scoped, tag = 'scoped memory for tpu_custom_call.1']
    #allocation7 [shape = 'u8[262144]{0}', space=vmem, size = 0x40000, scoped, tag = 'output window, operand 0']
    #allocation8 [shape = 'u8[262144]{0}', space=vmem, size = 0x40000, scoped, tag = 'output window, operand 1']
    #allocation9 [shape = 's32[2]{0}', space=sflag, size = 0x8, scoped, tag = 'scoped memory for tpu_custom_call.1']
    %13 = vsyncpa [#allocation3], 0
    %s14 = scalar_lea.sflag [#allocation3], 1
    %15 = vsyncpa %s14, 0
    %16 = vsyncpa [#allocation6], 0
    %17 = vsyncpa [#allocation4], 0
    %s18 = scalar_lea.sflag [#allocation4], 1
    %19 = vsyncpa %s18, 0
    %20 = vsyncpa [#allocation9], 0
    %s21 = scalar_lea.sflag [#allocation9], 1
    %22 = vsyncpa %s21, 0
    loop: start=0, step=1, limit=4
    $region2: #{tpu_custom_call.1} parent=1 // loop_pre_header
      _
    $region3: #{tpu_custom_call.1} parent=1 // loop_header
      %s24 = sphi 0, %s28
      %p25 = scmp.ge.s32.totalorder %s24, 4
      %s34 = sphi 0, %s36
      %s37 = sphi 0, %s34
      %s38 = sphi 0, %s37
      %s54 = sphi 0, %s38
      %s58 = sphi 0, %s58
      %s60 = sphi 0, %s58
      %s61 = sphi 0, %s60
      %s75 = sphi 0, %s61
      %s79 = sphi 0, %s79
      %s81 = sphi 0, %s79
      %s82 = sphi 0, %s81
      %s96 = sphi 0, %s82
      %s100 = sphi 0, %s100
      %s102 = sphi 0, %s100
      %s103 = sphi 0, %s102
      %s117 = sphi 0, %s103
      %s121 = sphi 0, %s121
      %s123 = sphi 0, %s121
      %s124 = sphi 0, %s123
      %s138 = sphi 0, %s124
      %s142 = sphi 0, %s142
      %s144 = sphi 0, %s142
      %s145 = sphi 0, %s144
      %s159 = sphi 0, %s145
      %s165 = sphi 0, %s167
      %s168 = sphi 0, %s165
      %s169 = sphi 0, %s168
      %s185 = sphi 0, %s169
      %s191 = sphi 0, %s193
      %s194 = sphi 0, %s191
      %s195 = sphi 0, %s194
      %s211 = sphi 0, %s195
    $region4: #{tpu_custom_call.1} parent=1 // loop_header_branch
      %27 = sbr.rel (%p25) target = $region8
    $region5: #{tpu_custom_call.1} parent=1 // loop_body
      %s29 = ssub.s32 %s24, 1
      %s30 = ssub.s32 %s24, 2
      %s31 = sadd.s32 %s24, 1
      %s32 = ssub.s32 %s24, %s31
      %p33 = scmp.eq.s32.totalorder %s32, 0
      %s35 = sadd.s32 %s34, 1
      %s36 = scalar_select %p33, %s34, %s35
      %p39 = pneg %p33
      %p40 = scmp.eq.s32.totalorder %s24, 1
      %p41 = por %p39, %p40
      %p42 = scmp.ne.s32.totalorder %s34, %s37
      %p43 = scmp.eq.s32.totalorder %s24, 0
      %p44 = por %p42, %p43
      %p45 = scmp.ne.s32.totalorder %s34, %s37
      %p46 = scmp.eq.s32.totalorder %s29, 1
      %p47 = por %p45, %p46
      %p48 = scmp.ne.s32.totalorder %s37, %s38
      %p49 = scmp.eq.s32.totalorder %s29, 0
      %p50 = por %p48, %p49
      %p51 = scmp.ne.s32.totalorder %s37, %s38
      %p52 = scmp.eq.s32.totalorder %s30, 1
      %p53 = por %p51, %p52
      %p55 = scmp.ne.s32.totalorder %s38, %s54
      %p56 = scmp.eq.s32.totalorder %s30, 0
      %p57 = por %p55, %p56
      %s59 = sadd.s32 %s58, 1
      %p62 = scmp.eq.s32.totalorder %s24, 1
      %p63 = scmp.ne.s32.totalorder %s58, %s60
      %p64 = scmp.eq.s32.totalorder %s24, 0
      %p65 = por %p63, %p64
      %p66 = scmp.ne.s32.totalorder %s58, %s60
      %p67 = scmp.eq.s32.totalorder %s29, 1
      %p68 = por %p66, %p67
      %p69 = scmp.ne.s32.totalorder %s60, %s61
      %p70 = scmp.eq.s32.totalorder %s29, 0
      %p71 = por %p69, %p70
      %p72 = scmp.ne.s32.totalorder %s60, %s61
      %p73 = scmp.eq.s32.totalorder %s30, 1
      %p74 = por %p72, %p73
      %p76 = scmp.ne.s32.totalorder %s61, %s75
      %p77 = scmp.eq.s32.totalorder %s30, 0
      %p78 = por %p76, %p77
      %s80 = sadd.s32 %s79, 1
      %p83 = scmp.eq.s32.totalorder %s24, 1
      %p84 = scmp.ne.s32.totalorder %s79, %s81
      %p85 = scmp.eq.s32.totalorder %s24, 0
      %p86 = por %p84, %p85
      %p87 = scmp.ne.s32.totalorder %s79, %s81
      %p88 = scmp.eq.s32.totalorder %s29, 1
      %p89 = por %p87, %p88
      %p90 = scmp.ne.s32.totalorder %s81, %s82
      %p91 = scmp.eq.s32.totalorder %s29, 0
      %p92 = por %p90, %p91
      %p93 = scmp.ne.s32.totalorder %s81, %s82
      %p94 = scmp.eq.s32.totalorder %s30, 1
      %p95 = por %p93, %p94
      %p97 = scmp.ne.s32.totalorder %s82, %s96
      %p98 = scmp.eq.s32.totalorder %s30, 0
      %p99 = por %p97, %p98
      %s101 = sadd.s32 %s100, 1
      %p104 = scmp.eq.s32.totalorder %s24, 1
      %p105 = scmp.ne.s32.totalorder %s100, %s102
      %p106 = scmp.eq.s32.totalorder %s24, 0
      %p107 = por %p105, %p106
      %p108 = scmp.ne.s32.totalorder %s100, %s102
      %p109 = scmp.eq.s32.totalorder %s29, 1
      %p110 = por %p108, %p109
      %p111 = scmp.ne.s32.totalorder %s102, %s103
      %p112 = scmp.eq.s32.totalorder %s29, 0
      %p113 = por %p111, %p112
      %p114 = scmp.ne.s32.totalorder %s102, %s103
      %p115 = scmp.eq.s32.totalorder %s30, 1
      %p116 = por %p114, %p115
      %p118 = scmp.ne.s32.totalorder %s103, %s117
      %p119 = scmp.eq.s32.totalorder %s30, 0
      %p120 = por %p118, %p119
      %s122 = sadd.s32 %s121, 1
      %p125 = scmp.eq.s32.totalorder %s24, 1
      %p126 = scmp.ne.s32.totalorder %s121, %s123
      %p127 = scmp.eq.s32.totalorder %s24, 0
      %p128 = por %p126, %p127
      %p129 = scmp.ne.s32.totalorder %s121, %s123
      %p130 = scmp.eq.s32.totalorder %s29, 1
      %p131 = por %p129, %p130
      %p132 = scmp.ne.s32.totalorder %s123, %s124
      %p133 = scmp.eq.s32.totalorder %s29, 0
      %p134 = por %p132, %p133
      %p135 = scmp.ne.s32.totalorder %s123, %s124
      %p136 = scmp.eq.s32.totalorder %s30, 1
      %p137 = por %p135, %p136
      %p139 = scmp.ne.s32.totalorder %s124, %s138
      %p140 = scmp.eq.s32.totalorder %s30, 0
      %p141 = por %p139, %p140
      %s143 = sadd.s32 %s142, 1
      %p146 = scmp.eq.s32.totalorder %s24, 1
      %p147 = scmp.ne.s32.totalorder %s142, %s144
      %p148 = scmp.eq.s32.totalorder %s24, 0
      %p149 = por %p147, %p148
      %p150 = scmp.ne.s32.totalorder %s142, %s144
      %p151 = scmp.eq.s32.totalorder %s29, 1
      %p152 = por %p150, %p151
      %p153 = scmp.ne.s32.totalorder %s144, %s145
      %p154 = scmp.eq.s32.totalorder %s29, 0
      %p155 = por %p153, %p154
      %p156 = scmp.ne.s32.totalorder %s144, %s145
      %p157 = scmp.eq.s32.totalorder %s30, 1
      %p158 = por %p156, %p157
      %p160 = scmp.ne.s32.totalorder %s145, %s159
      %p161 = scmp.eq.s32.totalorder %s30, 0
      %p162 = por %p160, %p161
      %s163 = ssub.s32 %s24, %s31
      %p164 = scmp.eq.s32.totalorder %s163, 0
      %s166 = sadd.s32 %s165, 1
      %s167 = scalar_select %p164, %s165, %s166
      %p170 = pneg %p164
      %p171 = scmp.eq.s32.totalorder %s24, 1
      %p172 = por %p170, %p171
      %p173 = scmp.ne.s32.totalorder %s165, %s168
      %p174 = scmp.eq.s32.totalorder %s24, 0
      %p175 = por %p173, %p174
      %p176 = scmp.ne.s32.totalorder %s165, %s168
      %p177 = scmp.eq.s32.totalorder %s29, 1
      %p178 = por %p176, %p177
      %p179 = scmp.ne.s32.totalorder %s168, %s169
      %p180 = scmp.eq.s32.totalorder %s29, 0
      %p181 = por %p179, %p180
      %p182 = scmp.ne.s32.totalorder %s168, %s169
      %p183 = scmp.eq.s32.totalorder %s30, 1
      %p184 = por %p182, %p183
      %p186 = scmp.ne.s32.totalorder %s169, %s185
      %p187 = scmp.eq.s32.totalorder %s30, 0
      %p188 = por %p186, %p187
      %s189 = ssub.s32 %s24, %s31
      %p190 = scmp.eq.s32.totalorder %s189, 0
      %s192 = sadd.s32 %s191, 1
      %s193 = scalar_select %p190, %s191, %s192
      %p196 = pneg %p190
      %p197 = scmp.eq.s32.totalorder %s24, 1
      %p198 = por %p196, %p197
      %p199 = scmp.ne.s32.totalorder %s191, %s194
      %p200 = scmp.eq.s32.totalorder %s24, 0
      %p201 = por %p199, %p200
      %p202 = scmp.ne.s32.totalorder %s191, %s194
      %p203 = scmp.eq.s32.totalorder %s29, 1
      %p204 = por %p202, %p203
      %p205 = scmp.ne.s32.totalorder %s194, %s195
      %p206 = scmp.eq.s32.totalorder %s29, 0
      %p207 = por %p205, %p206
      %p208 = scmp.ne.s32.totalorder %s194, %s195
      %p209 = scmp.eq.s32.totalorder %s30, 1
      %p210 = por %p208, %p209
      %p212 = scmp.ne.s32.totalorder %s195, %s211
      %p213 = scmp.eq.s32.totalorder %s30, 0
      %p214 = por %p212, %p213
      %p215 = scmp.le.s32.totalorder 1, %s24
      %p216 = scmp.lt.s32.totalorder %s24, 3
      %p217 = pnand %p215, %p216
      %p218 = pneg %p217
      // Predicated region
      $region9: #{tpu_custom_call.1} parent=5 // pred_check
        _
      $region10: #{tpu_custom_call.1} parent=5 // pred_check_branch
        %220 = sbr.rel (%p217) target = $region12
      $region11: #{tpu_custom_call.1} parent=5 // pred_region
        %s221 = ssub.s32 %s24, 1
        // Predicated region
        $region13: #{tpu_custom_call.1} parent=11 // pred_check
          %p222 = pneg %p71
        $region14: #{tpu_custom_call.1} parent=11 // pred_check_branch
          %224 = sbr.rel (%p222) target = $region16
        $region15: #{tpu_custom_call.1} parent=11 // pred_region
          _
        $region16: #{tpu_custom_call.1} parent=11 // pred_fallthru
          _
        // Predicated region
        $region17: #{tpu_custom_call.1} parent=11 // pred_check
          %p225 = pneg %p92
        $region18: #{tpu_custom_call.1} parent=11 // pred_check_branch
          %227 = sbr.rel (%p225) target = $region20
        $region19: #{tpu_custom_call.1} parent=11 // pred_region
          _
        $region20: #{tpu_custom_call.1} parent=11 // pred_fallthru
          _
        // Predicated region
        $region21: #{tpu_custom_call.1} parent=11 // pred_check
          %p228 = pneg %p113
        $region22: #{tpu_custom_call.1} parent=11 // pred_check_branch
          %230 = sbr.rel (%p228) target = $region24
        $region23: #{tpu_custom_call.1} parent=11 // pred_region
          _
        $region24: #{tpu_custom_call.1} parent=11 // pred_fallthru
          _
        // Predicated region
        $region25: #{tpu_custom_call.1} parent=11 // pred_check
          %p231 = pneg %p134
        $region26: #{tpu_custom_call.1} parent=11 // pred_check_branch
          %233 = sbr.rel (%p231) target = $region28
        $region27: #{tpu_custom_call.1} parent=11 // pred_region
          _
        $region28: #{tpu_custom_call.1} parent=11 // pred_fallthru
          _
        // Predicated region
        $region29: #{tpu_custom_call.1} parent=11 // pred_check
          %p234 = pneg %p155
        $region30: #{tpu_custom_call.1} parent=11 // pred_check_branch
          %236 = sbr.rel (%p234) target = $region32
        $region31: #{tpu_custom_call.1} parent=11 // pred_region
          %238 = vsyncadd [#allocation6], 0
          %s239 = sshll.u32 %s5, 4
          %s240 = int_to_ptr.hbm [resolvable:$true] %s239
          %s241 = sshll.u32 [#allocation5], 4
          %s242 = int_to_ptr.vmem [resolvable:$true] %s241
          %247 = dma.hbm_to_vmem [thread:$0]  %s240, 3072, %s242, [#allocation6], 192, 192, 12
        $region32: #{tpu_custom_call.1} parent=11 // pred_fallthru
          _
      $region12: #{tpu_custom_call.1} parent=5 // pred_fallthru
        _
      %p248 = scmp.lt.s32.totalorder %s24, 2
      // Predicated region
      $region33: #{tpu_custom_call.1} parent=5 // pred_check
        %p249 = pneg %p248
      $region34: #{tpu_custom_call.1} parent=5 // pred_check_branch
        %251 = sbr.rel (%p249) target = $region36
      $region35: #{tpu_custom_call.1} parent=5 // pred_region
        // Predicated region
        $region37: #{tpu_custom_call.1} parent=35 // pred_check
          %p252 = pneg %p44
        $region38: #{tpu_custom_call.1} parent=35 // pred_check_branch
          %254 = sbr.rel (%p252) target = $region40
        $region39: #{tpu_custom_call.1} parent=35 // pred_region
          %s255 = sand.u32 %s34, 1
          %s256 = scalar_lea.sflag [#allocation3], %s255
          %s257 = sand.u32 %s34, 1
          %s258 = smul.addr %s257, 256
          %s259 = scalar_lea.vmem [#allocation2], %s258
          %s260 = smul.u32 32, %s24
          %262 = vsyncadd %s256, 0
          %s263 = smul.addr %s260, 8
          %s264 = scalar_lea.hbm %s0, %s263
          %s265 = sshll.u32 %s264, 4
          %s266 = int_to_ptr.hbm [resolvable:$true] %s265
          %s267 = sshll.u32 %s259, 4
          %s268 = int_to_ptr.vmem [resolvable:$true] %s267
          %273 = dma.hbm_to_vmem [thread:$0]  %s266, 4096, %s268, %s256, 128, 128, 8
        $region40: #{tpu_custom_call.1} parent=35 // pred_fallthru
          _
      $region36: #{tpu_custom_call.1} parent=5 // pred_fallthru
        _
      %p274 = scmp.le.s32.totalorder 1, %s24
      %p275 = scmp.lt.s32.totalorder %s24, 3
      %p276 = pnand %p274, %p275
      %p277 = pneg %p276
      // Predicated region
      $region41: #{tpu_custom_call.1} parent=5 // pred_check
        _
      $region42: #{tpu_custom_call.1} parent=5 // pred_check_branch
        %279 = sbr.rel (%p276) target = $region44
      $region43: #{tpu_custom_call.1} parent=5 // pred_region
        %s280 = ssub.s32 %s24, 1
        %s281 = sand.u32 %s37, 1
        %s282 = scalar_lea.sflag [#allocation3], %s281
        %s283 = sand.u32 %s37, 1
        %s284 = smul.addr %s283, 256
        %s285 = scalar_lea.vmem [#allocation2], %s284
        // Predicated region
        $region45: #{tpu_custom_call.1} parent=43 // pred_check
          %p286 = pneg %p50
        $region46: #{tpu_custom_call.1} parent=43 // pred_check_branch
          %288 = sbr.rel (%p286) target = $region48
        $region47: #{tpu_custom_call.1} parent=43 // pred_region
          %290 = dma.done %s282, 4096
        $region48: #{tpu_custom_call.1} parent=43 // pred_fallthru
          _
        // Predicated region
        $region49: #{tpu_custom_call.1} parent=43 // pred_check
          %p291 = pneg %p155
        $region50: #{tpu_custom_call.1} parent=43 // pred_check_branch
          %293 = sbr.rel (%p291) target = $region52
        $region51: #{tpu_custom_call.1} parent=43 // pred_region
          %295 = dma.done [#allocation6], 3072
        $region52: #{tpu_custom_call.1} parent=43 // pred_fallthru
          _
        %s296 = sand.u32 %s37, 1
        %s297 = scalar_lea.sflag [#allocation3], %s296
        %s298 = sand.u32 %s37, 1
        %s299 = smul.addr %s298, 256
        %s300 = scalar_lea.vmem [#allocation2], %s299
        %p301 = pneg %p50
        %p302 = pneg %p47
        %p303 = pneg %p71
        %p304 = pneg %p68
        %p305 = pneg %p92
        %p306 = pneg %p89
        %p307 = pneg %p113
        %p308 = pneg %p110
        %p309 = pneg %p134
        %p310 = pneg %p131
        %p311 = pneg %p155
        %p312 = pneg %p152
        %p313 = pneg %p181
        %p314 = pneg %p178
        %s315 = sand.u32 %s168, 1
        %s316 = scalar_lea.sflag [#allocation4], %s315
        %s317 = sand.u32 %s168, 1
        %s318 = smul.addr %s317, 256
        %s319 = scalar_lea.vmem [#allocation7], %s318
        %p320 = pneg %p207
        %p321 = pneg %p204
        %s322 = sand.u32 %s194, 1
        %s323 = scalar_lea.sflag [#allocation9], %s322
        %s324 = sand.u32 %s194, 1
        %s325 = smul.addr %s324, 256
        %s326 = scalar_lea.vmem [#allocation8], %s325
        %s327 = smul.u32 32, %s29
        %s328 = smul.u32 32, %s29
        %s329 = smul.u32 32, %s29
        %v330 = vld [vmem:[%s285] sm:$0xff]
        %v331 = vld [vmem:[%s285 + $0x8] sm:$0xff]
        %v332 = vld [vmem:[%s285 + $0x10] sm:$0xff]
        %v333 = vld [vmem:[%s285 + $0x18] sm:$0xff]
        %v334 = vld [vmem:[%s285 + $0x20] sm:$0xff]
        %v335 = vld [vmem:[%s285 + $0x28] sm:$0xff]
        %v336 = vld [vmem:[%s285 + $0x30] sm:$0xff]
        %v337 = vld [vmem:[%s285 + $0x38] sm:$0xff]
        %v338 = vld [vmem:[%s285 + $0x40] sm:$0xff]
        %v339 = vld [vmem:[%s285 + $0x48] sm:$0xff]
        %v340 = vld [vmem:[%s285 + $0x50] sm:$0xff]
        %v341 = vld [vmem:[%s285 + $0x58] sm:$0xff]
        %v342 = vld [vmem:[%s285 + $0x60] sm:$0xff]
        %v343 = vld [vmem:[%s285 + $0x68] sm:$0xff]
        %v344 = vld [vmem:[%s285 + $0x70] sm:$0xff]
        %v345 = vld [vmem:[%s285 + $0x78] sm:$0xff]
        %v346 = vld [vmem:[%s285 + $0x80] sm:$0xff]
        %v347 = vld [vmem:[%s285 + $0x88] sm:$0xff]
        %v348 = vld [vmem:[%s285 + $0x90] sm:$0xff]
        %v349 = vld [vmem:[%s285 + $0x98] sm:$0xff]
        %v350 = vld [vmem:[%s285 + $0xa0] sm:$0xff]
        %v351 = vld [vmem:[%s285 + $0xa8] sm:$0xff]
        %v352 = vld [vmem:[%s285 + $0xb0] sm:$0xff]
        %v353 = vld [vmem:[%s285 + $0xb8] sm:$0xff]
        %v354 = vld [vmem:[%s285 + $0xc0] sm:$0xff]
        %v355 = vld [vmem:[%s285 + $0xc8] sm:$0xff]
        %v356 = vld [vmem:[%s285 + $0xd0] sm:$0xff]
        %v357 = vld [vmem:[%s285 + $0xd8] sm:$0xff]
        %v358 = vld [vmem:[%s285 + $0xe0] sm:$0xff]
        %v359 = vld [vmem:[%s285 + $0xe8] sm:$0xff]
        %v360 = vld [vmem:[%s285 + $0xf0] sm:$0xff]
        %v361 = vld [vmem:[%s285 + $0xf8] sm:$0xff]
        %v362 = vld [vmem:[%s1] sm:$0xff]
        %v363 = vld [vmem:[%s1 + $0x8] sm:$0xff]
        %v364 = vld [vmem:[%s1 + $0x10] sm:$0xff]
        %v365 = vld [vmem:[%s1 + $0x18] sm:$0xff]
        %v366 = vld [vmem:[%s1 + $0x20] sm:$0xff]
        %v367 = vld [vmem:[%s1 + $0x28] sm:$0xff]
        %v368 = vld [vmem:[%s1 + $0x30] sm:$0xff]
        %v369 = vld [vmem:[%s1 + $0x38] sm:$0xff]
        %v370 = vld [vmem:[%s1 + $0x40] sm:$0xff]
        %v371 = vld [vmem:[%s1 + $0x48] sm:$0xff]
        %v372 = vld [vmem:[%s1 + $0x50] sm:$0xff]
        %v373 = vld [vmem:[%s1 + $0x58] sm:$0xff]
        %v374 = vld [vmem:[%s1 + $0x60] sm:$0xff]
        %v375 = vld [vmem:[%s1 + $0x68] sm:$0xff]
        %v376 = vld [vmem:[%s1 + $0x70] sm:$0xff]
        %v377 = vld [vmem:[%s1 + $0x78] sm:$0xff]
        %v378 = vld [vmem:[%s2] sm:$0x1]
        %v380 = vperm.slane %v378, 0
        %382 = vmatpush.msra.mxu0 %v377
        %383 = vmatpush.msra.mxu0 %v376
        %384 = vmatpush.msra.mxu0 %v375
        %385 = vmatpush.msra.mxu0 %v374
        %386 = vmatpush.msra.mxu0 %v373
        %387 = vmatpush.msra.mxu0 %v372
        %388 = vmatpush.msra.mxu0 %v371
        %389 = vmatpush.msra.mxu0 %v370
        %390 = vmatpush.msra.mxu0 %v369
        %391 = vmatpush.msra.mxu0 %v368
        %392 = vmatpush.msra.mxu0 %v367
        %393 = vmatpush.msra.mxu0 %v366
        %394 = vmatpush.msra.mxu0 %v365
        %395 = vmatpush.msra.mxu0 %v364
        %396 = vmatpush.msra.mxu0 %v363
        %397 = vmatpush.msra.mxu0 %v362
        %398 = vmatmul.f32.gmra.mxu0 %v330
        %v399 = vpop.f32.mrf.mxu0
        %v400 = vadd.f32 %v380, %v399
        %401 = vmatmul.f32.gmra.mxu0 %v331
        %v402 = vpop.f32.mrf.mxu0
        %v403 = vadd.f32 %v380, %v402
        %404 = vmatmul.f32.gmra.mxu0 %v332
        %v405 = vpop.f32.mrf.mxu0
        %v406 = vadd.f32 %v380, %v405
        %407 = vmatmul.f32.gmra.mxu0 %v333
        %v408 = vpop.f32.mrf.mxu0
        %v409 = vadd.f32 %v380, %v408
        %410 = vmatmul.f32.gmra.mxu0 %v334
        %v411 = vpop.f32.mrf.mxu0
        %v412 = vadd.f32 %v380, %v411
        %413 = vmatmul.f32.gmra.mxu0 %v335
        %v414 = vpop.f32.mrf.mxu0
        %v415 = vadd.f32 %v380, %v414
        %416 = vmatmul.f32.gmra.mxu0 %v336
        %v417 = vpop.f32.mrf.mxu0
        %v418 = vadd.f32 %v380, %v417
        %419 = vmatmul.f32.gmra.mxu0 %v337
        %v420 = vpop.f32.mrf.mxu0
        %v421 = vadd.f32 %v380, %v420
        %422 = vmatmul.f32.gmra.mxu0 %v338
        %v423 = vpop.f32.mrf.mxu0
        %v424 = vadd.f32 %v380, %v423
        %425 = vmatmul.f32.gmra.mxu0 %v339
        %v426 = vpop.f32.mrf.mxu0
        %v427 = vadd.f32 %v380, %v426
        %428 = vmatmul.f32.gmra.mxu0 %v340
        %v429 = vpop.f32.mrf.mxu0
        %v430 = vadd.f32 %v380, %v429
        %431 = vmatmul.f32.gmra.mxu0 %v341
        %v432 = vpop.f32.mrf.mxu0
        %v433 = vadd.f32 %v380, %v432
        %434 = vmatmul.f32.gmra.mxu0 %v342
        %v435 = vpop.f32.mrf.mxu0
        %v436 = vadd.f32 %v380, %v435
        %437 = vmatmul.f32.gmra.mxu0 %v343
        %v438 = vpop.f32.mrf.mxu0
        %v439 = vadd.f32 %v380, %v438
        %440 = vmatmul.f32.gmra.mxu0 %v344
        %v441 = vpop.f32.mrf.mxu0
        %v442 = vadd.f32 %v380, %v441
        %443 = vmatmul.f32.gmra.mxu0 %v345
        %v444 = vpop.f32.mrf.mxu0
        %v445 = vadd.f32 %v380, %v444
        %446 = vmatmul.f32.gmra.mxu0 %v346
        %v447 = vpop.f32.mrf.mxu0
        %v448 = vadd.f32 %v380, %v447
        %449 = vmatmul.f32.gmra.mxu0 %v347
        %v450 = vpop.f32.mrf.mxu0
        %v451 = vadd.f32 %v380, %v450
        %452 = vmatmul.f32.gmra.mxu0 %v348
        %v453 = vpop.f32.mrf.mxu0
        %v454 = vadd.f32 %v380, %v453
        %455 = vmatmul.f32.gmra.mxu0 %v349
        %v456 = vpop.f32.mrf.mxu0
        %v457 = vadd.f32 %v380, %v456
        %458 = vmatmul.f32.gmra.mxu0 %v350
        %v459 = vpop.f32.mrf.mxu0
        %v460 = vadd.f32 %v380, %v459
        %461 = vmatmul.f32.gmra.mxu0 %v351
        %v462 = vpop.f32.mrf.mxu0
        %v463 = vadd.f32 %v380, %v462
        %464 = vmatmul.f32.gmra.mxu0 %v352
        %v465 = vpop.f32.mrf.mxu0
        %v466 = vadd.f32 %v380, %v465
        %467 = vmatmul.f32.gmra.mxu0 %v353
        %v468 = vpop.f32.mrf.mxu0
        %v469 = vadd.f32 %v380, %v468
        %470 = vmatmul.f32.gmra.mxu0 %v354
        %v471 = vpop.f32.mrf.mxu0
        %v472 = vadd.f32 %v380, %v471
        %473 = vmatmul.f32.gmra.mxu0 %v355
        %v474 = vpop.f32.mrf.mxu0
        %v475 = vadd.f32 %v380, %v474
        %476 = vmatmul.f32.gmra.mxu0 %v356
        %v477 = vpop.f32.mrf.mxu0
        %v478 = vadd.f32 %v380, %v477
        %479 = vmatmul.f32.gmra.mxu0 %v357
        %v480 = vpop.f32.mrf.mxu0
        %v481 = vadd.f32 %v380, %v480
        %482 = vmatmul.f32.gmra.mxu0 %v358
        %v483 = vpop.f32.mrf.mxu0
        %v484 = vadd.f32 %v380, %v483
        %485 = vmatmul.f32.gmra.mxu0 %v359
        %v486 = vpop.f32.mrf.mxu0
        %v487 = vadd.f32 %v380, %v486
        %488 = vmatmul.f32.gmra.mxu0 %v360
        %v489 = vpop.f32.mrf.mxu0
        %v490 = vadd.f32 %v380, %v489
        %491 = vmatmul.f32.gmra.mxu0 %v361
        %v492 = vpop.f32.mrf.mxu0
        %v493 = vadd.f32 %v380, %v492
        %494 = vdwg.mxu0
        %v495 = vld [vmem:[%s3] sm:$0x7]
        %v496 = vsub.f32 %v495, 1.0
        %v497 = vmul.f32 %v496, 1e+30
        %v498 = vperm.slane %v497, 0
        %v499 = vadd.f32 %v400, %v498
        %v500 = vadd.f32 %v403, %v498
        %v501 = vadd.f32 %v406, %v498
        %v502 = vadd.f32 %v409, %v498
        %v503 = vadd.f32 %v412, %v498
        %v504 = vadd.f32 %v415, %v498
        %v505 = vadd.f32 %v418, %v498
        %v506 = vadd.f32 %v421, %v498
        %v507 = vadd.f32 %v424, %v498
        %v508 = vadd.f32 %v427, %v498
        %v509 = vadd.f32 %v430, %v498
        %v510 = vadd.f32 %v433, %v498
        %v511 = vadd.f32 %v436, %v498
        %v512 = vadd.f32 %v439, %v498
        %v513 = vadd.f32 %v442, %v498
        %v514 = vadd.f32 %v445, %v498
        %v515 = vadd.f32 %v448, %v498
        %v516 = vadd.f32 %v451, %v498
        %v517 = vadd.f32 %v454, %v498
        %v518 = vadd.f32 %v457, %v498
        %v519 = vadd.f32 %v460, %v498
        %v520 = vadd.f32 %v463, %v498
        %v521 = vadd.f32 %v466, %v498
        %v522 = vadd.f32 %v469, %v498
        %v523 = vadd.f32 %v472, %v498
        %v524 = vadd.f32 %v475, %v498
        %v525 = vadd.f32 %v478, %v498
        %v526 = vadd.f32 %v481, %v498
        %v527 = vadd.f32 %v484, %v498
        %v528 = vadd.f32 %v487, %v498
        %v529 = vadd.f32 %v490, %v498
        %v530 = vadd.f32 %v493, %v498
        %531 = vmax.xlane.f32.xlu0 %v499
        %v532 = vpop.xlane.xlu0 %531
        %533 = vmax.xlane.f32.xlu0 %v500
        %v534 = vpop.xlane.xlu0 %533
        %535 = vmax.xlane.f32.xlu0 %v501
        %v536 = vpop.xlane.xlu0 %535
        %537 = vmax.xlane.f32.xlu0 %v502
        %v538 = vpop.xlane.xlu0 %537
        %539 = vmax.xlane.f32.xlu0 %v503
        %v540 = vpop.xlane.xlu0 %539
        %541 = vmax.xlane.f32.xlu0 %v504
        %v542 = vpop.xlane.xlu0 %541
        %543 = vmax.xlane.f32.xlu0 %v505
        %v544 = vpop.xlane.xlu0 %543
        %545 = vmax.xlane.f32.xlu0 %v506
        %v546 = vpop.xlane.xlu0 %545
        %547 = vmax.xlane.f32.xlu0 %v507
        %v548 = vpop.xlane.xlu0 %547
        %549 = vmax.xlane.f32.xlu0 %v508
        %v550 = vpop.xlane.xlu0 %549
        %551 = vmax.xlane.f32.xlu0 %v509
        %v552 = vpop.xlane.xlu0 %551
        %553 = vmax.xlane.f32.xlu0 %v510
        %v554 = vpop.xlane.xlu0 %553
        %555 = vmax.xlane.f32.xlu0 %v511
        %v556 = vpop.xlane.xlu0 %555
        %557 = vmax.xlane.f32.xlu0 %v512
        %v558 = vpop.xlane.xlu0 %557
        %559 = vmax.xlane.f32.xlu0 %v513
        %v560 = vpop.xlane.xlu0 %559
        %561 = vmax.xlane.f32.xlu0 %v514
        %v562 = vpop.xlane.xlu0 %561
        %563 = vmax.xlane.f32.xlu0 %v515
        %v564 = vpop.xlane.xlu0 %563
        %565 = vmax.xlane.f32.xlu0 %v516
        %v566 = vpop.xlane.xlu0 %565
        %567 = vmax.xlane.f32.xlu0 %v517
        %v568 = vpop.xlane.xlu0 %567
        %569 = vmax.xlane.f32.xlu0 %v518
        %v570 = vpop.xlane.xlu0 %569
        %571 = vmax.xlane.f32.xlu0 %v519
        %v572 = vpop.xlane.xlu0 %571
        %573 = vmax.xlane.f32.xlu0 %v520
        %v574 = vpop.xlane.xlu0 %573
        %575 = vmax.xlane.f32.xlu0 %v521
        %v576 = vpop.xlane.xlu0 %575
        %577 = vmax.xlane.f32.xlu0 %v522
        %v578 = vpop.xlane.xlu0 %577
        %579 = vmax.xlane.f32.xlu0 %v523
        %v580 = vpop.xlane.xlu0 %579
        %581 = vmax.xlane.f32.xlu0 %v524
        %v582 = vpop.xlane.xlu0 %581
        %583 = vmax.xlane.f32.xlu0 %v525
        %v584 = vpop.xlane.xlu0 %583
        %585 = vmax.xlane.f32.xlu0 %v526
        %v586 = vpop.xlane.xlu0 %585
        %587 = vmax.xlane.f32.xlu0 %v527
        %v588 = vpop.xlane.xlu0 %587
        %589 = vmax.xlane.f32.xlu0 %v528
        %v590 = vpop.xlane.xlu0 %589
        %591 = vmax.xlane.f32.xlu0 %v529
        %v592 = vpop.xlane.xlu0 %591
        %593 = vmax.xlane.f32.xlu0 %v530
        %v594 = vpop.xlane.xlu0 %593
        %v595 = vperm.slane %v495, 0
        %v596 = vmul.f32 %v532, %v595
        %v597 = vmul.f32 %v534, %v595
        %v598 = vmul.f32 %v536, %v595
        %v599 = vmul.f32 %v538, %v595
        %v600 = vmul.f32 %v540, %v595
        %v601 = vmul.f32 %v542, %v595
        %v602 = vmul.f32 %v544, %v595
        %v603 = vmul.f32 %v546, %v595
        %v604 = vmul.f32 %v548, %v595
        %v605 = vmul.f32 %v550, %v595
        %v606 = vmul.f32 %v552, %v595
        %v607 = vmul.f32 %v554, %v595
        %v608 = vmul.f32 %v556, %v595
        %v609 = vmul.f32 %v558, %v595
        %v610 = vmul.f32 %v560, %v595
        %v611 = vmul.f32 %v562, %v595
        %v612 = vmul.f32 %v564, %v595
        %v613 = vmul.f32 %v566, %v595
        %v614 = vmul.f32 %v568, %v595
        %v615 = vmul.f32 %v570, %v595
        %v616 = vmul.f32 %v572, %v595
        %v617 = vmul.f32 %v574, %v595
        %v618 = vmul.f32 %v576, %v595
        %v619 = vmul.f32 %v578, %v595
        %v620 = vmul.f32 %v580, %v595
        %v621 = vmul.f32 %v582, %v595
        %v622 = vmul.f32 %v584, %v595
        %v623 = vmul.f32 %v586, %v595
        %v624 = vmul.f32 %v588, %v595
        %v625 = vmul.f32 %v590, %v595
        %v626 = vmul.f32 %v592, %v595
        %v627 = vmul.f32 %v594, %v595
        %v628 = vadd.f32 %v596, 0.0
        %v629 = vadd.f32 %v597, 0.0
        %v630 = vadd.f32 %v598, 0.0
        %v631 = vadd.f32 %v599, 0.0
        %v632 = vadd.f32 %v600, 0.0
        %v633 = vadd.f32 %v601, 0.0
        %v634 = vadd.f32 %v602, 0.0
        %v635 = vadd.f32 %v603, 0.0
        %v636 = vadd.f32 %v604, 0.0
        %v637 = vadd.f32 %v605, 0.0
        %v638 = vadd.f32 %v606, 0.0
        %v639 = vadd.f32 %v607, 0.0
        %v640 = vadd.f32 %v608, 0.0
        %v641 = vadd.f32 %v609, 0.0
        %v642 = vadd.f32 %v610, 0.0
        %v643 = vadd.f32 %v611, 0.0
        %v644 = vadd.f32 %v612, 0.0
        %v645 = vadd.f32 %v613, 0.0
        %v646 = vadd.f32 %v614, 0.0
        %v647 = vadd.f32 %v615, 0.0
        %v648 = vadd.f32 %v616, 0.0
        %v649 = vadd.f32 %v617, 0.0
        %v650 = vadd.f32 %v618, 0.0
        %v651 = vadd.f32 %v619, 0.0
        %v652 = vadd.f32 %v620, 0.0
        %v653 = vadd.f32 %v621, 0.0
        %v654 = vadd.f32 %v622, 0.0
        %v655 = vadd.f32 %v623, 0.0
        %v656 = vadd.f32 %v624, 0.0
        %v657 = vadd.f32 %v625, 0.0
        %v658 = vadd.f32 %v626, 0.0
        %v659 = vadd.f32 %v627, 0.0
        %v660 = vperm.slane %v497, 1
        %v661 = vadd.f32 %v400, %v660
        %v662 = vadd.f32 %v403, %v660
        %v663 = vadd.f32 %v406, %v660
        %v664 = vadd.f32 %v409, %v660
        %v665 = vadd.f32 %v412, %v660
        %v666 = vadd.f32 %v415, %v660
        %v667 = vadd.f32 %v418, %v660
        %v668 = vadd.f32 %v421, %v660
        %v669 = vadd.f32 %v424, %v660
        %v670 = vadd.f32 %v427, %v660
        %v671 = vadd.f32 %v430, %v660
        %v672 = vadd.f32 %v433, %v660
        %v673 = vadd.f32 %v436, %v660
        %v674 = vadd.f32 %v439, %v660
        %v675 = vadd.f32 %v442, %v660
        %v676 = vadd.f32 %v445, %v660
        %v677 = vadd.f32 %v448, %v660
        %v678 = vadd.f32 %v451, %v660
        %v679 = vadd.f32 %v454, %v660
        %v680 = vadd.f32 %v457, %v660
        %v681 = vadd.f32 %v460, %v660
        %v682 = vadd.f32 %v463, %v660
        %v683 = vadd.f32 %v466, %v660
        %v684 = vadd.f32 %v469, %v660
        %v685 = vadd.f32 %v472, %v660
        %v686 = vadd.f32 %v475, %v660
        %v687 = vadd.f32 %v478, %v660
        %v688 = vadd.f32 %v481, %v660
        %v689 = vadd.f32 %v484, %v660
        %v690 = vadd.f32 %v487, %v660
        %v691 = vadd.f32 %v490, %v660
        %v692 = vadd.f32 %v493, %v660
        %693 = vmax.xlane.f32.xlu0 %v661
        %v694 = vpop.xlane.xlu0 %693
        %695 = vmax.xlane.f32.xlu0 %v662
        %v696 = vpop.xlane.xlu0 %695
        %697 = vmax.xlane.f32.xlu0 %v663
        %v698 = vpop.xlane.xlu0 %697
        %699 = vmax.xlane.f32.xlu0 %v664
        %v700 = vpop.xlane.xlu0 %699
        %701 = vmax.xlane.f32.xlu0 %v665
        %v702 = vpop.xlane.xlu0 %701
        %703 = vmax.xlane.f32.xlu0 %v666
        %v704 = vpop.xlane.xlu0 %703
        %705 = vmax.xlane.f32.xlu0 %v667
        %v706 = vpop.xlane.xlu0 %705
        %707 = vmax.xlane.f32.xlu0 %v668
        %v708 = vpop.xlane.xlu0 %707
        %709 = vmax.xlane.f32.xlu0 %v669
        %v710 = vpop.xlane.xlu0 %709
        %711 = vmax.xlane.f32.xlu0 %v670
        %v712 = vpop.xlane.xlu0 %711
        %713 = vmax.xlane.f32.xlu0 %v671
        %v714 = vpop.xlane.xlu0 %713
        %715 = vmax.xlane.f32.xlu0 %v672
        %v716 = vpop.xlane.xlu0 %715
        %717 = vmax.xlane.f32.xlu0 %v673
        %v718 = vpop.xlane.xlu0 %717
        %719 = vmax.xlane.f32.xlu0 %v674
        %v720 = vpop.xlane.xlu0 %719
        %721 = vmax.xlane.f32.xlu0 %v675
        %v722 = vpop.xlane.xlu0 %721
        %723 = vmax.xlane.f32.xlu0 %v676
        %v724 = vpop.xlane.xlu0 %723
        %725 = vmax.xlane.f32.xlu0 %v677
        %v726 = vpop.xlane.xlu0 %725
        %727 = vmax.xlane.f32.xlu0 %v678
        %v728 = vpop.xlane.xlu0 %727
        %729 = vmax.xlane.f32.xlu0 %v679
        %v730 = vpop.xlane.xlu0 %729
        %731 = vmax.xlane.f32.xlu0 %v680
        %v732 = vpop.xlane.xlu0 %731
        %733 = vmax.xlane.f32.xlu0 %v681
        %v734 = vpop.xlane.xlu0 %733
        %735 = vmax.xlane.f32.xlu0 %v682
        %v736 = vpop.xlane.xlu0 %735
        %737 = vmax.xlane.f32.xlu0 %v683
        %v738 = vpop.xlane.xlu0 %737
        %739 = vmax.xlane.f32.xlu0 %v684
        %v740 = vpop.xlane.xlu0 %739
        %741 = vmax.xlane.f32.xlu0 %v685
        %v742 = vpop.xlane.xlu0 %741
        %743 = vmax.xlane.f32.xlu0 %v686
        %v744 = vpop.xlane.xlu0 %743
        %745 = vmax.xlane.f32.xlu0 %v687
        %v746 = vpop.xlane.xlu0 %745
        %747 = vmax.xlane.f32.xlu0 %v688
        %v748 = vpop.xlane.xlu0 %747
        %749 = vmax.xlane.f32.xlu0 %v689
        %v750 = vpop.xlane.xlu0 %749
        %751 = vmax.xlane.f32.xlu0 %v690
        %v752 = vpop.xlane.xlu0 %751
        %753 = vmax.xlane.f32.xlu0 %v691
        %v754 = vpop.xlane.xlu0 %753
        %755 = vmax.xlane.f32.xlu0 %v692
        %v756 = vpop.xlane.xlu0 %755
        %v757 = vperm.slane %v495, 1
        %v758 = vmul.f32 %v694, %v757
        %v759 = vmul.f32 %v696, %v757
        %v760 = vmul.f32 %v698, %v757
        %v761 = vmul.f32 %v700, %v757
        %v762 = vmul.f32 %v702, %v757
        %v763 = vmul.f32 %v704, %v757
        %v764 = vmul.f32 %v706, %v757
        %v765 = vmul.f32 %v708, %v757
        %v766 = vmul.f32 %v710, %v757
        %v767 = vmul.f32 %v712, %v757
        %v768 = vmul.f32 %v714, %v757
        %v769 = vmul.f32 %v716, %v757
        %v770 = vmul.f32 %v718, %v757
        %v771 = vmul.f32 %v720, %v757
        %v772 = vmul.f32 %v722, %v757
        %v773 = vmul.f32 %v724, %v757
        %v774 = vmul.f32 %v726, %v757
        %v775 = vmul.f32 %v728, %v757
        %v776 = vmul.f32 %v730, %v757
        %v777 = vmul.f32 %v732, %v757
        %v778 = vmul.f32 %v734, %v757
        %v779 = vmul.f32 %v736, %v757
        %v780 = vmul.f32 %v738, %v757
        %v781 = vmul.f32 %v740, %v757
        %v782 = vmul.f32 %v742, %v757
        %v783 = vmul.f32 %v744, %v757
        %v784 = vmul.f32 %v746, %v757
        %v785 = vmul.f32 %v748, %v757
        %v786 = vmul.f32 %v750, %v757
        %v787 = vmul.f32 %v752, %v757
        %v788 = vmul.f32 %v754, %v757
        %v789 = vmul.f32 %v756, %v757
        %v790 = vadd.f32 %v628, %v758
        %v791 = vadd.f32 %v629, %v759
        %v792 = vadd.f32 %v630, %v760
        %v793 = vadd.f32 %v631, %v761
        %v794 = vadd.f32 %v632, %v762
        %v795 = vadd.f32 %v633, %v763
        %v796 = vadd.f32 %v634, %v764
        %v797 = vadd.f32 %v635, %v765
        %v798 = vadd.f32 %v636, %v766
        %v799 = vadd.f32 %v637, %v767
        %v800 = vadd.f32 %v638, %v768
        %v801 = vadd.f32 %v639, %v769
        %v802 = vadd.f32 %v640, %v770
        %v803 = vadd.f32 %v641, %v771
        %v804 = vadd.f32 %v642, %v772
        %v805 = vadd.f32 %v643, %v773
        %v806 = vadd.f32 %v644, %v774
        %v807 = vadd.f32 %v645, %v775
        %v808 = vadd.f32 %v646, %v776
        %v809 = vadd.f32 %v647, %v777
        %v810 = vadd.f32 %v648, %v778
        %v811 = vadd.f32 %v649, %v779
        %v812 = vadd.f32 %v650, %v780
        %v813 = vadd.f32 %v651, %v781
        %v814 = vadd.f32 %v652, %v782
        %v815 = vadd.f32 %v653, %v783
        %v816 = vadd.f32 %v654, %v784
        %v817 = vadd.f32 %v655, %v785
        %v818 = vadd.f32 %v656, %v786
        %v819 = vadd.f32 %v657, %v787
        %v820 = vadd.f32 %v658, %v788
        %v821 = vadd.f32 %v659, %v789
        %v822 = vperm.slane %v497, 2
        %v823 = vadd.f32 %v400, %v822
        %v824 = vadd.f32 %v403, %v822
        %v825 = vadd.f32 %v406, %v822
        %v826 = vadd.f32 %v409, %v822
        %v827 = vadd.f32 %v412, %v822
        %v828 = vadd.f32 %v415, %v822
        %v829 = vadd.f32 %v418, %v822
        %v830 = vadd.f32 %v421, %v822
        %v831 = vadd.f32 %v424, %v822
        %v832 = vadd.f32 %v427, %v822
        %v833 = vadd.f32 %v430, %v822
        %v834 = vadd.f32 %v433, %v822
        %v835 = vadd.f32 %v436, %v822
        %v836 = vadd.f32 %v439, %v822
        %v837 = vadd.f32 %v442, %v822
        %v838 = vadd.f32 %v445, %v822
        %v839 = vadd.f32 %v448, %v822
        %v840 = vadd.f32 %v451, %v822
        %v841 = vadd.f32 %v454, %v822
        %v842 = vadd.f32 %v457, %v822
        %v843 = vadd.f32 %v460, %v822
        %v844 = vadd.f32 %v463, %v822
        %v845 = vadd.f32 %v466, %v822
        %v846 = vadd.f32 %v469, %v822
        %v847 = vadd.f32 %v472, %v822
        %v848 = vadd.f32 %v475, %v822
        %v849 = vadd.f32 %v478, %v822
        %v850 = vadd.f32 %v481, %v822
        %v851 = vadd.f32 %v484, %v822
        %v852 = vadd.f32 %v487, %v822
        %v853 = vadd.f32 %v490, %v822
        %v854 = vadd.f32 %v493, %v822
        %855 = vmax.xlane.f32.xlu0 %v823
        %v856 = vpop.xlane.xlu0 %855
        %857 = vmax.xlane.f32.xlu0 %v824
        %v858 = vpop.xlane.xlu0 %857
        %859 = vmax.xlane.f32.xlu0 %v825
        %v860 = vpop.xlane.xlu0 %859
        %861 = vmax.xlane.f32.xlu0 %v826
        %v862 = vpop.xlane.xlu0 %861
        %863 = vmax.xlane.f32.xlu0 %v827
        %v864 = vpop.xlane.xlu0 %863
        %865 = vmax.xlane.f32.xlu0 %v828
        %v866 = vpop.xlane.xlu0 %865
        %867 = vmax.xlane.f32.xlu0 %v829
        %v868 = vpop.xlane.xlu0 %867
        %869 = vmax.xlane.f32.xlu0 %v830
        %v870 = vpop.xlane.xlu0 %869
        %871 = vmax.xlane.f32.xlu0 %v831
        %v872 = vpop.xlane.xlu0 %871
        %873 = vmax.xlane.f32.xlu0 %v832
        %v874 = vpop.xlane.xlu0 %873
        %875 = vmax.xlane.f32.xlu0 %v833
        %v876 = vpop.xlane.xlu0 %875
        %877 = vmax.xlane.f32.xlu0 %v834
        %v878 = vpop.xlane.xlu0 %877
        %879 = vmax.xlane.f32.xlu0 %v835
        %v880 = vpop.xlane.xlu0 %879
        %881 = vmax.xlane.f32.xlu0 %v836
        %v882 = vpop.xlane.xlu0 %881
        %883 = vmax.xlane.f32.xlu0 %v837
        %v884 = vpop.xlane.xlu0 %883
        %885 = vmax.xlane.f32.xlu0 %v838
        %v886 = vpop.xlane.xlu0 %885
        %887 = vmax.xlane.f32.xlu0 %v839
        %v888 = vpop.xlane.xlu0 %887
        %889 = vmax.xlane.f32.xlu0 %v840
        %v890 = vpop.xlane.xlu0 %889
        %891 = vmax.xlane.f32.xlu0 %v841
        %v892 = vpop.xlane.xlu0 %891
        %893 = vmax.xlane.f32.xlu0 %v842
        %v894 = vpop.xlane.xlu0 %893
        %895 = vmax.xlane.f32.xlu0 %v843
        %v896 = vpop.xlane.xlu0 %895
        %897 = vmax.xlane.f32.xlu0 %v844
        %v898 = vpop.xlane.xlu0 %897
        %899 = vmax.xlane.f32.xlu0 %v845
        %v900 = vpop.xlane.xlu0 %899
        %901 = vmax.xlane.f32.xlu0 %v846
        %v902 = vpop.xlane.xlu0 %901
        %903 = vmax.xlane.f32.xlu0 %v847
        %v904 = vpop.xlane.xlu0 %903
        %905 = vmax.xlane.f32.xlu0 %v848
        %v906 = vpop.xlane.xlu0 %905
        %907 = vmax.xlane.f32.xlu0 %v849
        %v908 = vpop.xlane.xlu0 %907
        %909 = vmax.xlane.f32.xlu0 %v850
        %v910 = vpop.xlane.xlu0 %909
        %911 = vmax.xlane.f32.xlu0 %v851
        %v912 = vpop.xlane.xlu0 %911
        %913 = vmax.xlane.f32.xlu0 %v852
        %v914 = vpop.xlane.xlu0 %913
        %915 = vmax.xlane.f32.xlu0 %v853
        %v916 = vpop.xlane.xlu0 %915
        %917 = vmax.xlane.f32.xlu0 %v854
        %v918 = vpop.xlane.xlu0 %917
        %v919 = vperm.slane %v495, 2
        %v920 = vmul.f32 %v856, %v919
        %v921 = vmul.f32 %v858, %v919
        %v922 = vmul.f32 %v860, %v919
        %v923 = vmul.f32 %v862, %v919
        %v924 = vmul.f32 %v864, %v919
        %v925 = vmul.f32 %v866, %v919
        %v926 = vmul.f32 %v868, %v919
        %v927 = vmul.f32 %v870, %v919
        %v928 = vmul.f32 %v872, %v919
        %v929 = vmul.f32 %v874, %v919
        %v930 = vmul.f32 %v876, %v919
        %v931 = vmul.f32 %v878, %v919
        %v932 = vmul.f32 %v880, %v919
        %v933 = vmul.f32 %v882, %v919
        %v934 = vmul.f32 %v884, %v919
        %v935 = vmul.f32 %v886, %v919
        %v936 = vmul.f32 %v888, %v919
        %v937 = vmul.f32 %v890, %v919
        %v938 = vmul.f32 %v892, %v919
        %v939 = vmul.f32 %v894, %v919
        %v940 = vmul.f32 %v896, %v919
        %v941 = vmul.f32 %v898, %v919
        %v942 = vmul.f32 %v900, %v919
        %v943 = vmul.f32 %v902, %v919
        %v944 = vmul.f32 %v904, %v919
        %v945 = vmul.f32 %v906, %v919
        %v946 = vmul.f32 %v908, %v919
        %v947 = vmul.f32 %v910, %v919
        %v948 = vmul.f32 %v912, %v919
        %v949 = vmul.f32 %v914, %v919
        %v950 = vmul.f32 %v916, %v919
        %v951 = vmul.f32 %v918, %v919
        %v952 = vadd.f32 %v790, %v920
        %v953 = vadd.f32 %v791, %v921
        %v954 = vadd.f32 %v792, %v922
        %v955 = vadd.f32 %v793, %v923
        %v956 = vadd.f32 %v794, %v924
        %v957 = vadd.f32 %v795, %v925
        %v958 = vadd.f32 %v796, %v926
        %v959 = vadd.f32 %v797, %v927
        %v960 = vadd.f32 %v798, %v928
        %v961 = vadd.f32 %v799, %v929
        %v962 = vadd.f32 %v800, %v930
        %v963 = vadd.f32 %v801, %v931
        %v964 = vadd.f32 %v802, %v932
        %v965 = vadd.f32 %v803, %v933
        %v966 = vadd.f32 %v804, %v934
        %v967 = vadd.f32 %v805, %v935
        %v968 = vadd.f32 %v806, %v936
        %v969 = vadd.f32 %v807, %v937
        %v970 = vadd.f32 %v808, %v938
        %v971 = vadd.f32 %v809, %v939
        %v972 = vadd.f32 %v810, %v940
        %v973 = vadd.f32 %v811, %v941
        %v974 = vadd.f32 %v812, %v942
        %v975 = vadd.f32 %v813, %v943
        %v976 = vadd.f32 %v814, %v944
        %v977 = vadd.f32 %v815, %v945
        %v978 = vadd.f32 %v816, %v946
        %v979 = vadd.f32 %v817, %v947
        %v980 = vadd.f32 %v818, %v948
        %v981 = vadd.f32 %v819, %v949
        %v982 = vadd.f32 %v820, %v950
        %v983 = vadd.f32 %v821, %v951
        %v984 = vsub.f32 %v400, %v952
        %v985 = vsub.f32 %v403, %v953
        %v986 = vsub.f32 %v406, %v954
        %v987 = vsub.f32 %v409, %v955
        %v988 = vsub.f32 %v412, %v956
        %v989 = vsub.f32 %v415, %v957
        %v990 = vsub.f32 %v418, %v958
        %v991 = vsub.f32 %v421, %v959
        %v992 = vsub.f32 %v424, %v960
        %v993 = vsub.f32 %v427, %v961
        %v994 = vsub.f32 %v430, %v962
        %v995 = vsub.f32 %v433, %v963
        %v996 = vsub.f32 %v436, %v964
        %v997 = vsub.f32 %v439, %v965
        %v998 = vsub.f32 %v442, %v966
        %v999 = vsub.f32 %v445, %v967
        %v1000 = vsub.f32 %v448, %v968
        %v1001 = vsub.f32 %v451, %v969
        %v1002 = vsub.f32 %v454, %v970
        %v1003 = vsub.f32 %v457, %v971
        %v1004 = vsub.f32 %v460, %v972
        %v1005 = vsub.f32 %v463, %v973
        %v1006 = vsub.f32 %v466, %v974
        %v1007 = vsub.f32 %v469, %v975
        %v1008 = vsub.f32 %v472, %v976
        %v1009 = vsub.f32 %v475, %v977
        %v1010 = vsub.f32 %v478, %v978
        %v1011 = vsub.f32 %v481, %v979
        %v1012 = vsub.f32 %v484, %v980
        %v1013 = vsub.f32 %v487, %v981
        %v1014 = vsub.f32 %v490, %v982
        %v1015 = vsub.f32 %v493, %v983
        %v1016 = vmul.f32 %v984, 1.442695
        %v1017 = vpow.pop %v1016
        %v1018 = vmul.f32 %v985, 1.442695
        %v1019 = vpow.pop %v1018
        %v1020 = vmul.f32 %v986, 1.442695
        %v1021 = vpow.pop %v1020
        %v1022 = vmul.f32 %v987, 1.442695
        %v1023 = vpow.pop %v1022
        %v1024 = vmul.f32 %v988, 1.442695
        %v1025 = vpow.pop %v1024
        %v1026 = vmul.f32 %v989, 1.442695
        %v1027 = vpow.pop %v1026
        %v1028 = vmul.f32 %v990, 1.442695
        %v1029 = vpow.pop %v1028
        %v1030 = vmul.f32 %v991, 1.442695
        %v1031 = vpow.pop %v1030
        %v1032 = vmul.f32 %v992, 1.442695
        %v1033 = vpow.pop %v1032
        %v1034 = vmul.f32 %v993, 1.442695
        %v1035 = vpow.pop %v1034
        %v1036 = vmul.f32 %v994, 1.442695
        %v1037 = vpow.pop %v1036
        %v1038 = vmul.f32 %v995, 1.442695
        %v1039 = vpow.pop %v1038
        %v1040 = vmul.f32 %v996, 1.442695
        %v1041 = vpow.pop %v1040
        %v1042 = vmul.f32 %v997, 1.442695
        %v1043 = vpow.pop %v1042
        %v1044 = vmul.f32 %v998, 1.442695
        %v1045 = vpow.pop %v1044
        %v1046 = vmul.f32 %v999, 1.442695
        %v1047 = vpow.pop %v1046
        %v1048 = vmul.f32 %v1000, 1.442695
        %v1049 = vpow.pop %v1048
        %v1050 = vmul.f32 %v1001, 1.442695
        %v1051 = vpow.pop %v1050
        %v1052 = vmul.f32 %v1002, 1.442695
        %v1053 = vpow.pop %v1052
        %v1054 = vmul.f32 %v1003, 1.442695
        %v1055 = vpow.pop %v1054
        %v1056 = vmul.f32 %v1004, 1.442695
        %v1057 = vpow.pop %v1056
        %v1058 = vmul.f32 %v1005, 1.442695
        %v1059 = vpow.pop %v1058
        %v1060 = vmul.f32 %v1006, 1.442695
        %v1061 = vpow.pop %v1060
        %v1062 = vmul.f32 %v1007, 1.442695
        %v1063 = vpow.pop %v1062
        %v1064 = vmul.f32 %v1008, 1.442695
        %v1065 = vpow.pop %v1064
        %v1066 = vmul.f32 %v1009, 1.442695
        %v1067 = vpow.pop %v1066
        %v1068 = vmul.f32 %v1010, 1.442695
        %v1069 = vpow.pop %v1068
        %v1070 = vmul.f32 %v1011, 1.442695
        %v1071 = vpow.pop %v1070
        %v1072 = vmul.f32 %v1012, 1.442695
        %v1073 = vpow.pop %v1072
        %v1074 = vmul.f32 %v1013, 1.442695
        %v1075 = vpow.pop %v1074
        %v1076 = vmul.f32 %v1014, 1.442695
        %v1077 = vpow.pop %v1076
        %v1078 = vmul.f32 %v1015, 1.442695
        %v1079 = vpow.pop %v1078
        %v1080 = vld [vmem:[%s4] sm:$0xff]
        %v1081 = vld [vmem:[%s4 + $0x8] sm:$0xff]
        %v1082 = vld [vmem:[%s4 + $0x10] sm:$0xff]
        %v1083 = vld [vmem:[%s4 + $0x18] sm:$0xff]
        %v1084 = vld [vmem:[%s4 + $0x20] sm:$0xff]
        %v1085 = vld [vmem:[%s4 + $0x28] sm:$0xff]
        %v1086 = vld [vmem:[%s4 + $0x30] sm:$0xff]
        %v1087 = vld [vmem:[%s4 + $0x38] sm:$0xff]
        %v1088 = vld [vmem:[%s4 + $0x40] sm:$0xff]
        %v1089 = vld [vmem:[%s4 + $0x48] sm:$0xff]
        %v1090 = vld [vmem:[%s4 + $0x50] sm:$0xff]
        %v1091 = vld [vmem:[%s4 + $0x58] sm:$0xff]
        %v1092 = vld [vmem:[%s4 + $0x60] sm:$0xff]
        %v1093 = vld [vmem:[%s4 + $0x68] sm:$0xff]
        %v1094 = vld [vmem:[%s4 + $0x70] sm:$0xff]
        %v1095 = vld [vmem:[%s4 + $0x78] sm:$0xff]
        %1096 = vmatpush.msra.mxu0 %v1095
        %1097 = vmatpush.msra.mxu0 %v1094
        %1098 = vmatpush.msra.mxu0 %v1093
        %1099 = vmatpush.msra.mxu0 %v1092
        %1100 = vmatpush.msra.mxu0 %v1091
        %1101 = vmatpush.msra.mxu0 %v1090
        %1102 = vmatpush.msra.mxu0 %v1089
        %1103 = vmatpush.msra.mxu0 %v1088
        %1104 = vmatpush.msra.mxu0 %v1087
        %1105 = vmatpush.msra.mxu0 %v1086
        %1106 = vmatpush.msra.mxu0 %v1085
        %1107 = vmatpush.msra.mxu0 %v1084
        %1108 = vmatpush.msra.mxu0 %v1083
        %1109 = vmatpush.msra.mxu0 %v1082
        %1110 = vmatpush.msra.mxu0 %v1081
        %1111 = vmatpush.msra.mxu0 %v1080
        %1112 = vmatmul.f32.gmra.mxu0 %v1017
        %v1113 = vpop.f32.mrf.mxu0
        %v1114 = vadd.f32 0.0, %v1113
        %1115 = vmatmul.f32.gmra.mxu0 %v1019
        %v1116 = vpop.f32.mrf.mxu0
        %v1117 = vadd.f32 0.0, %v1116
        %1118 = vmatmul.f32.gmra.mxu0 %v1021
        %v1119 = vpop.f32.mrf.mxu0
        %v1120 = vadd.f32 0.0, %v1119
        %1121 = vmatmul.f32.gmra.mxu0 %v1023
        %v1122 = vpop.f32.mrf.mxu0
        %v1123 = vadd.f32 0.0, %v1122
        %1124 = vmatmul.f32.gmra.mxu0 %v1025
        %v1125 = vpop.f32.mrf.mxu0
        %v1126 = vadd.f32 0.0, %v1125
        %1127 = vmatmul.f32.gmra.mxu0 %v1027
        %v1128 = vpop.f32.mrf.mxu0
        %v1129 = vadd.f32 0.0, %v1128
        %1130 = vmatmul.f32.gmra.mxu0 %v1029
        %v1131 = vpop.f32.mrf.mxu0
        %v1132 = vadd.f32 0.0, %v1131
        %1133 = vmatmul.f32.gmra.mxu0 %v1031
        %v1134 = vpop.f32.mrf.mxu0
        %v1135 = vadd.f32 0.0, %v1134
        %1136 = vmatmul.f32.gmra.mxu0 %v1033
        %v1137 = vpop.f32.mrf.mxu0
        %v1138 = vadd.f32 0.0, %v1137
        %1139 = vmatmul.f32.gmra.mxu0 %v1035
        %v1140 = vpop.f32.mrf.mxu0
        %v1141 = vadd.f32 0.0, %v1140
        %1142 = vmatmul.f32.gmra.mxu0 %v1037
        %v1143 = vpop.f32.mrf.mxu0
        %v1144 = vadd.f32 0.0, %v1143
        %1145 = vmatmul.f32.gmra.mxu0 %v1039
        %v1146 = vpop.f32.mrf.mxu0
        %v1147 = vadd.f32 0.0, %v1146
        %1148 = vmatmul.f32.gmra.mxu0 %v1041
        %v1149 = vpop.f32.mrf.mxu0
        %v1150 = vadd.f32 0.0, %v1149
        %1151 = vmatmul.f32.gmra.mxu0 %v1043
        %v1152 = vpop.f32.mrf.mxu0
        %v1153 = vadd.f32 0.0, %v1152
        %1154 = vmatmul.f32.gmra.mxu0 %v1045
        %v1155 = vpop.f32.mrf.mxu0
        %v1156 = vadd.f32 0.0, %v1155
        %1157 = vmatmul.f32.gmra.mxu0 %v1047
        %v1158 = vpop.f32.mrf.mxu0
        %v1159 = vadd.f32 0.0, %v1158
        %1160 = vmatmul.f32.gmra.mxu0 %v1049
        %v1161 = vpop.f32.mrf.mxu0
        %v1162 = vadd.f32 0.0, %v1161
        %1163 = vmatmul.f32.gmra.mxu0 %v1051
        %v1164 = vpop.f32.mrf.mxu0
        %v1165 = vadd.f32 0.0, %v1164
        %1166 = vmatmul.f32.gmra.mxu0 %v1053
        %v1167 = vpop.f32.mrf.mxu0
        %v1168 = vadd.f32 0.0, %v1167
        %1169 = vmatmul.f32.gmra.mxu0 %v1055
        %v1170 = vpop.f32.mrf.mxu0
        %v1171 = vadd.f32 0.0, %v1170
        %1172 = vmatmul.f32.gmra.mxu0 %v1057
        %v1173 = vpop.f32.mrf.mxu0
        %v1174 = vadd.f32 0.0, %v1173
        %1175 = vmatmul.f32.gmra.mxu0 %v1059
        %v1176 = vpop.f32.mrf.mxu0
        %v1177 = vadd.f32 0.0, %v1176
        %1178 = vmatmul.f32.gmra.mxu0 %v1061
        %v1179 = vpop.f32.mrf.mxu0
        %v1180 = vadd.f32 0.0, %v1179
        %1181 = vmatmul.f32.gmra.mxu0 %v1063
        %v1182 = vpop.f32.mrf.mxu0
        %v1183 = vadd.f32 0.0, %v1182
        %1184 = vmatmul.f32.gmra.mxu0 %v1065
        %v1185 = vpop.f32.mrf.mxu0
        %v1186 = vadd.f32 0.0, %v1185
        %1187 = vmatmul.f32.gmra.mxu0 %v1067
        %v1188 = vpop.f32.mrf.mxu0
        %v1189 = vadd.f32 0.0, %v1188
        %1190 = vmatmul.f32.gmra.mxu0 %v1069
        %v1191 = vpop.f32.mrf.mxu0
        %v1192 = vadd.f32 0.0, %v1191
        %1193 = vmatmul.f32.gmra.mxu0 %v1071
        %v1194 = vpop.f32.mrf.mxu0
        %v1195 = vadd.f32 0.0, %v1194
        %1196 = vmatmul.f32.gmra.mxu0 %v1073
        %v1197 = vpop.f32.mrf.mxu0
        %v1198 = vadd.f32 0.0, %v1197
        %1199 = vmatmul.f32.gmra.mxu0 %v1075
        %v1200 = vpop.f32.mrf.mxu0
        %v1201 = vadd.f32 0.0, %v1200
        %1202 = vmatmul.f32.gmra.mxu0 %v1077
        %v1203 = vpop.f32.mrf.mxu0
        %v1204 = vadd.f32 0.0, %v1203
        %1205 = vmatmul.f32.gmra.mxu0 %v1079
        %v1206 = vpop.f32.mrf.mxu0
        %v1207 = vadd.f32 0.0, %v1206
        %1208 = vdwg.mxu0
        %v1209 = vrcp.pop %v1114
        %v1210 = vrcp.pop %v1117
        %v1211 = vrcp.pop %v1120
        %v1212 = vrcp.pop %v1123
        %v1213 = vrcp.pop %v1126
        %v1214 = vrcp.pop %v1129
        %v1215 = vrcp.pop %v1132
        %v1216 = vrcp.pop %v1135
        %v1217 = vrcp.pop %v1138
        %v1218 = vrcp.pop %v1141
        %v1219 = vrcp.pop %v1144
        %v1220 = vrcp.pop %v1147
        %v1221 = vrcp.pop %v1150
        %v1222 = vrcp.pop %v1153
        %v1223 = vrcp.pop %v1156
        %v1224 = vrcp.pop %v1159
        %v1225 = vrcp.pop %v1162
        %v1226 = vrcp.pop %v1165
        %v1227 = vrcp.pop %v1168
        %v1228 = vrcp.pop %v1171
        %v1229 = vrcp.pop %v1174
        %v1230 = vrcp.pop %v1177
        %v1231 = vrcp.pop %v1180
        %v1232 = vrcp.pop %v1183
        %v1233 = vrcp.pop %v1186
        %v1234 = vrcp.pop %v1189
        %v1235 = vrcp.pop %v1192
        %v1236 = vrcp.pop %v1195
        %v1237 = vrcp.pop %v1198
        %v1238 = vrcp.pop %v1201
        %v1239 = vrcp.pop %v1204
        %v1240 = vrcp.pop %v1207
        %v1241 = vmul.f32 %v1114, %v1209
        %v1242 = vmul.f32 %v1117, %v1210
        %v1243 = vmul.f32 %v1120, %v1211
        %v1244 = vmul.f32 %v1123, %v1212
        %v1245 = vmul.f32 %v1126, %v1213
        %v1246 = vmul.f32 %v1129, %v1214
        %v1247 = vmul.f32 %v1132, %v1215
        %v1248 = vmul.f32 %v1135, %v1216
        %v1249 = vmul.f32 %v1138, %v1217
        %v1250 = vmul.f32 %v1141, %v1218
        %v1251 = vmul.f32 %v1144, %v1219
        %v1252 = vmul.f32 %v1147, %v1220
        %v1253 = vmul.f32 %v1150, %v1221
        %v1254 = vmul.f32 %v1153, %v1222
        %v1255 = vmul.f32 %v1156, %v1223
        %v1256 = vmul.f32 %v1159, %v1224
        %v1257 = vmul.f32 %v1162, %v1225
        %v1258 = vmul.f32 %v1165, %v1226
        %v1259 = vmul.f32 %v1168, %v1227
        %v1260 = vmul.f32 %v1171, %v1228
        %v1261 = vmul.f32 %v1174, %v1229
        %v1262 = vmul.f32 %v1177, %v1230
        %v1263 = vmul.f32 %v1180, %v1231
        %v1264 = vmul.f32 %v1183, %v1232
        %v1265 = vmul.f32 %v1186, %v1233
        %v1266 = vmul.f32 %v1189, %v1234
        %v1267 = vmul.f32 %v1192, %v1235
        %v1268 = vmul.f32 %v1195, %v1236
        %v1269 = vmul.f32 %v1198, %v1237
        %v1270 = vmul.f32 %v1201, %v1238
        %v1271 = vmul.f32 %v1204, %v1239
        %v1272 = vmul.f32 %v1207, %v1240
        %v1273 = vsub.f32 2.0, %v1241
        %v1274 = vsub.f32 2.0, %v1242
        %v1275 = vsub.f32 2.0, %v1243
        %v1276 = vsub.f32 2.0, %v1244
        %v1277 = vsub.f32 2.0, %v1245
        %v1278 = vsub.f32 2.0, %v1246
        %v1279 = vsub.f32 2.0, %v1247
        %v1280 = vsub.f32 2.0, %v1248
        %v1281 = vsub.f32 2.0, %v1249
        %v1282 = vsub.f32 2.0, %v1250
        %v1283 = vsub.f32 2.0, %v1251
        %v1284 = vsub.f32 2.0, %v1252
        %v1285 = vsub.f32 2.0, %v1253
        %v1286 = vsub.f32 2.0, %v1254
        %v1287 = vsub.f32 2.0, %v1255
        %v1288 = vsub.f32 2.0, %v1256
        %v1289 = vsub.f32 2.0, %v1257
        %v1290 = vsub.f32 2.0, %v1258
        %v1291 = vsub.f32 2.0, %v1259
        %v1292 = vsub.f32 2.0, %v1260
        %v1293 = vsub.f32 2.0, %v1261
        %v1294 = vsub.f32 2.0, %v1262
        %v1295 = vsub.f32 2.0, %v1263
        %v1296 = vsub.f32 2.0, %v1264
        %v1297 = vsub.f32 2.0, %v1265
        %v1298 = vsub.f32 2.0, %v1266
        %v1299 = vsub.f32 2.0, %v1267
        %v1300 = vsub.f32 2.0, %v1268
        %v1301 = vsub.f32 2.0, %v1269
        %v1302 = vsub.f32 2.0, %v1270
        %v1303 = vsub.f32 2.0, %v1271
        %v1304 = vsub.f32 2.0, %v1272
        %v1305 = vmul.f32 %v1209, %v1273
        %v1306 = vmul.f32 %v1210, %v1274
        %v1307 = vmul.f32 %v1211, %v1275
        %v1308 = vmul.f32 %v1212, %v1276
        %v1309 = vmul.f32 %v1213, %v1277
        %v1310 = vmul.f32 %v1214, %v1278
        %v1311 = vmul.f32 %v1215, %v1279
        %v1312 = vmul.f32 %v1216, %v1280
        %v1313 = vmul.f32 %v1217, %v1281
        %v1314 = vmul.f32 %v1218, %v1282
        %v1315 = vmul.f32 %v1219, %v1283
        %v1316 = vmul.f32 %v1220, %v1284
        %v1317 = vmul.f32 %v1221, %v1285
        %v1318 = vmul.f32 %v1222, %v1286
        %v1319 = vmul.f32 %v1223, %v1287
        %v1320 = vmul.f32 %v1224, %v1288
        %v1321 = vmul.f32 %v1225, %v1289
        %v1322 = vmul.f32 %v1226, %v1290
        %v1323 = vmul.f32 %v1227, %v1291
        %v1324 = vmul.f32 %v1228, %v1292
        %v1325 = vmul.f32 %v1229, %v1293
        %v1326 = vmul.f32 %v1230, %v1294
        %v1327 = vmul.f32 %v1231, %v1295
        %v1328 = vmul.f32 %v1232, %v1296
        %v1329 = vmul.f32 %v1233, %v1297
        %v1330 = vmul.f32 %v1234, %v1298
        %v1331 = vmul.f32 %v1235, %v1299
        %v1332 = vmul.f32 %v1236, %v1300
        %v1333 = vmul.f32 %v1237, %v1301
        %v1334 = vmul.f32 %v1238, %v1302
        %v1335 = vmul.f32 %v1239, %v1303
        %v1336 = vmul.f32 %v1240, %v1304
        %vm1337 = vcmask 23552
        %v1339 = vsel %vm1337, %v1305, 0
        %v1342 = vsel %vm1337, %v1306, 0
        %v1345 = vsel %vm1337, %v1307, 0
        %v1348 = vsel %vm1337, %v1308, 0
        %v1351 = vsel %vm1337, %v1309, 0
        %v1354 = vsel %vm1337, %v1310, 0
        %v1357 = vsel %vm1337, %v1311, 0
        %v1360 = vsel %vm1337, %v1312, 0
        %v1363 = vsel %vm1337, %v1313, 0
        %v1366 = vsel %vm1337, %v1314, 0
        %v1369 = vsel %vm1337, %v1315, 0
        %v1372 = vsel %vm1337, %v1316, 0
        %v1375 = vsel %vm1337, %v1317, 0
        %v1378 = vsel %vm1337, %v1318, 0
        %v1381 = vsel %vm1337, %v1319, 0
        %v1384 = vsel %vm1337, %v1320, 0
        %v1387 = vsel %vm1337, %v1321, 0
        %v1390 = vsel %vm1337, %v1322, 0
        %v1393 = vsel %vm1337, %v1323, 0
        %v1396 = vsel %vm1337, %v1324, 0
        %v1399 = vsel %vm1337, %v1325, 0
        %v1402 = vsel %vm1337, %v1326, 0
        %v1405 = vsel %vm1337, %v1327, 0
        %v1408 = vsel %vm1337, %v1328, 0
        %v1411 = vsel %vm1337, %v1329, 0
        %v1414 = vsel %vm1337, %v1330, 0
        %v1417 = vsel %vm1337, %v1331, 0
        %v1420 = vsel %vm1337, %v1332, 0
        %v1423 = vsel %vm1337, %v1333, 0
        %v1426 = vsel %vm1337, %v1334, 0
        %v1429 = vsel %vm1337, %v1335, 0
        %v1432 = vsel %vm1337, %v1336, 0
        %vm1434 = vcmask 1042432
        %v1436 = vsel %vm1434, %v495, 0
        %1438 = vmatpush.msra.mxu0 0.0
        %1439 = vmatpush.msra.mxu0 0.0
        %1440 = vmatpush.msra.mxu0 0.0
        %1441 = vmatpush.msra.mxu0 0.0
        %1442 = vmatpush.msra.mxu0 0.0
        %1443 = vmatpush.msra.mxu0 0.0
        %1444 = vmatpush.msra.mxu0 0.0
        %1445 = vmatpush.msra.mxu0 0.0
        %1446 = vmatpush.msra.mxu0 0.0
        %1447 = vmatpush.msra.mxu0 0.0
        %1448 = vmatpush.msra.mxu0 0.0
        %1449 = vmatpush.msra.mxu0 0.0
        %1450 = vmatpush.msra.mxu0 0.0
        %1451 = vmatpush.msra.mxu0 0.0
        %1452 = vmatpush.msra.mxu0 0.0
        %1453 = vmatpush.msra.mxu0 %v1436
        %1454 = vmatmul.f32.gmra.mxu0 %v1339
        %v1455 = vpop.f32.mrf.mxu0
        %v1456 = vadd.f32 0.0, %v1455
        %1457 = vmatmul.f32.gmra.mxu0 %v1342
        %v1458 = vpop.f32.mrf.mxu0
        %v1459 = vadd.f32 0.0, %v1458
        %1460 = vmatmul.f32.gmra.mxu0 %v1345
        %v1461 = vpop.f32.mrf.mxu0
        %v1462 = vadd.f32 0.0, %v1461
        %1463 = vmatmul.f32.gmra.mxu0 %v1348
        %v1464 = vpop.f32.mrf.mxu0
        %v1465 = vadd.f32 0.0, %v1464
        %1466 = vmatmul.f32.gmra.mxu0 %v1351
        %v1467 = vpop.f32.mrf.mxu0
        %v1468 = vadd.f32 0.0, %v1467
        %1469 = vmatmul.f32.gmra.mxu0 %v1354
        %v1470 = vpop.f32.mrf.mxu0
        %v1471 = vadd.f32 0.0, %v1470
        %1472 = vmatmul.f32.gmra.mxu0 %v1357
        %v1473 = vpop.f32.mrf.mxu0
        %v1474 = vadd.f32 0.0, %v1473
        %1475 = vmatmul.f32.gmra.mxu0 %v1360
        %v1476 = vpop.f32.mrf.mxu0
        %v1477 = vadd.f32 0.0, %v1476
        %1478 = vmatmul.f32.gmra.mxu0 %v1363
        %v1479 = vpop.f32.mrf.mxu0
        %v1480 = vadd.f32 0.0, %v1479
        %1481 = vmatmul.f32.gmra.mxu0 %v1366
        %v1482 = vpop.f32.mrf.mxu0
        %v1483 = vadd.f32 0.0, %v1482
        %1484 = vmatmul.f32.gmra.mxu0 %v1369
        %v1485 = vpop.f32.mrf.mxu0
        %v1486 = vadd.f32 0.0, %v1485
        %1487 = vmatmul.f32.gmra.mxu0 %v1372
        %v1488 = vpop.f32.mrf.mxu0
        %v1489 = vadd.f32 0.0, %v1488
        %1490 = vmatmul.f32.gmra.mxu0 %v1375
        %v1491 = vpop.f32.mrf.mxu0
        %v1492 = vadd.f32 0.0, %v1491
        %1493 = vmatmul.f32.gmra.mxu0 %v1378
        %v1494 = vpop.f32.mrf.mxu0
        %v1495 = vadd.f32 0.0, %v1494
        %1496 = vmatmul.f32.gmra.mxu0 %v1381
        %v1497 = vpop.f32.mrf.mxu0
        %v1498 = vadd.f32 0.0, %v1497
        %1499 = vmatmul.f32.gmra.mxu0 %v1384
        %v1500 = vpop.f32.mrf.mxu0
        %v1501 = vadd.f32 0.0, %v1500
        %1502 = vmatmul.f32.gmra.mxu0 %v1387
        %v1503 = vpop.f32.mrf.mxu0
        %v1504 = vadd.f32 0.0, %v1503
        %1505 = vmatmul.f32.gmra.mxu0 %v1390
        %v1506 = vpop.f32.mrf.mxu0
        %v1507 = vadd.f32 0.0, %v1506
        %1508 = vmatmul.f32.gmra.mxu0 %v1393
        %v1509 = vpop.f32.mrf.mxu0
        %v1510 = vadd.f32 0.0, %v1509
        %1511 = vmatmul.f32.gmra.mxu0 %v1396
        %v1512 = vpop.f32.mrf.mxu0
        %v1513 = vadd.f32 0.0, %v1512
        %1514 = vmatmul.f32.gmra.mxu0 %v1399
        %v1515 = vpop.f32.mrf.mxu0
        %v1516 = vadd.f32 0.0, %v1515
        %1517 = vmatmul.f32.gmra.mxu0 %v1402
        %v1518 = vpop.f32.mrf.mxu0
        %v1519 = vadd.f32 0.0, %v1518
        %1520 = vmatmul.f32.gmra.mxu0 %v1405
        %v1521 = vpop.f32.mrf.mxu0
        %v1522 = vadd.f32 0.0, %v1521
        %1523 = vmatmul.f32.gmra.mxu0 %v1408
        %v1524 = vpop.f32.mrf.mxu0
        %v1525 = vadd.f32 0.0, %v1524
        %1526 = vmatmul.f32.gmra.mxu0 %v1411
        %v1527 = vpop.f32.mrf.mxu0
        %v1528 = vadd.f32 0.0, %v1527
        %1529 = vmatmul.f32.gmra.mxu0 %v1414
        %v1530 = vpop.f32.mrf.mxu0
        %v1531 = vadd.f32 0.0, %v1530
        %1532 = vmatmul.f32.gmra.mxu0 %v1417
        %v1533 = vpop.f32.mrf.mxu0
        %v1534 = vadd.f32 0.0, %v1533
        %1535 = vmatmul.f32.gmra.mxu0 %v1420
        %v1536 = vpop.f32.mrf.mxu0
        %v1537 = vadd.f32 0.0, %v1536
        %1538 = vmatmul.f32.gmra.mxu0 %v1423
        %v1539 = vpop.f32.mrf.mxu0
        %v1540 = vadd.f32 0.0, %v1539
        %1541 = vmatmul.f32.gmra.mxu0 %v1426
        %v1542 = vpop.f32.mrf.mxu0
        %v1543 = vadd.f32 0.0, %v1542
        %1544 = vmatmul.f32.gmra.mxu0 %v1429
        %v1545 = vpop.f32.mrf.mxu0
        %v1546 = vadd.f32 0.0, %v1545
        %1547 = vmatmul.f32.gmra.mxu0 %v1432
        %v1548 = vpop.f32.mrf.mxu0
        %v1549 = vadd.f32 0.0, %v1548
        %1550 = vdwg.mxu0
        %v1551 = vmul.f32 %v1017, %v1456
        %v1552 = vmul.f32 %v1019, %v1459
        %v1553 = vmul.f32 %v1021, %v1462
        %v1554 = vmul.f32 %v1023, %v1465
        %v1555 = vmul.f32 %v1025, %v1468
        %v1556 = vmul.f32 %v1027, %v1471
        %v1557 = vmul.f32 %v1029, %v1474
        %v1558 = vmul.f32 %v1031, %v1477
        %v1559 = vmul.f32 %v1033, %v1480
        %v1560 = vmul.f32 %v1035, %v1483
        %v1561 = vmul.f32 %v1037, %v1486
        %v1562 = vmul.f32 %v1039, %v1489
        %v1563 = vmul.f32 %v1041, %v1492
        %v1564 = vmul.f32 %v1043, %v1495
        %v1565 = vmul.f32 %v1045, %v1498
        %v1566 = vmul.f32 %v1047, %v1501
        %v1567 = vmul.f32 %v1049, %v1504
        %v1568 = vmul.f32 %v1051, %v1507
        %v1569 = vmul.f32 %v1053, %v1510
        %v1570 = vmul.f32 %v1055, %v1513
        %v1571 = vmul.f32 %v1057, %v1516
        %v1572 = vmul.f32 %v1059, %v1519
        %v1573 = vmul.f32 %v1061, %v1522
        %v1574 = vmul.f32 %v1063, %v1525
        %v1575 = vmul.f32 %v1065, %v1528
        %v1576 = vmul.f32 %v1067, %v1531
        %v1577 = vmul.f32 %v1069, %v1534
        %v1578 = vmul.f32 %v1071, %v1537
        %v1579 = vmul.f32 %v1073, %v1540
        %v1580 = vmul.f32 %v1075, %v1543
        %v1581 = vmul.f32 %v1077, %v1546
        %v1582 = vmul.f32 %v1079, %v1549
        %1583 = vst [vmem:[%s326] sm:$0xff] %v1551
        %1584 = vst [vmem:[%s326 + $0x8] sm:$0xff] %v1552
        %1585 = vst [vmem:[%s326 + $0x10] sm:$0xff] %v1553
        %1586 = vst [vmem:[%s326 + $0x18] sm:$0xff] %v1554
        %1587 = vst [vmem:[%s326 + $0x20] sm:$0xff] %v1555
        %1588 = vst [vmem:[%s326 + $0x28] sm:$0xff] %v1556
        %1589 = vst [vmem:[%s326 + $0x30] sm:$0xff] %v1557
        %1590 = vst [vmem:[%s326 + $0x38] sm:$0xff] %v1558
        %1591 = vst [vmem:[%s326 + $0x40] sm:$0xff] %v1559
        %1592 = vst [vmem:[%s326 + $0x48] sm:$0xff] %v1560
        %1593 = vst [vmem:[%s326 + $0x50] sm:$0xff] %v1561
        %1594 = vst [vmem:[%s326 + $0x58] sm:$0xff] %v1562
        %1595 = vst [vmem:[%s326 + $0x60] sm:$0xff] %v1563
        %1596 = vst [vmem:[%s326 + $0x68] sm:$0xff] %v1564
        %1597 = vst [vmem:[%s326 + $0x70] sm:$0xff] %v1565
        %1598 = vst [vmem:[%s326 + $0x78] sm:$0xff] %v1566
        %1599 = vst [vmem:[%s326 + $0x80] sm:$0xff] %v1567
        %1600 = vst [vmem:[%s326 + $0x88] sm:$0xff] %v1568
        %1601 = vst [vmem:[%s326 + $0x90] sm:$0xff] %v1569
        %1602 = vst [vmem:[%s326 + $0x98] sm:$0xff] %v1570
        %1603 = vst [vmem:[%s326 + $0xa0] sm:$0xff] %v1571
        %1604 = vst [vmem:[%s326 + $0xa8] sm:$0xff] %v1572
        %1605 = vst [vmem:[%s326 + $0xb0] sm:$0xff] %v1573
        %1606 = vst [vmem:[%s326 + $0xb8] sm:$0xff] %v1574
        %1607 = vst [vmem:[%s326 + $0xc0] sm:$0xff] %v1575
        %1608 = vst [vmem:[%s326 + $0xc8] sm:$0xff] %v1576
        %1609 = vst [vmem:[%s326 + $0xd0] sm:$0xff] %v1577
        %1610 = vst [vmem:[%s326 + $0xd8] sm:$0xff] %v1578
        %1611 = vst [vmem:[%s326 + $0xe0] sm:$0xff] %v1579
        %1612 = vst [vmem:[%s326 + $0xe8] sm:$0xff] %v1580
        %1613 = vst [vmem:[%s326 + $0xf0] sm:$0xff] %v1581
        %1614 = vst [vmem:[%s326 + $0xf8] sm:$0xff] %v1582
        %v1615 = vpack.c.bf16 %v1552, %v1551
        %v1616 = vpack.c.bf16 %v1554, %v1553
        %v1617 = vpack.c.bf16 %v1556, %v1555
        %v1618 = vpack.c.bf16 %v1558, %v1557
        %v1619 = vpack.c.bf16 %v1560, %v1559
        %v1620 = vpack.c.bf16 %v1562, %v1561
        %v1621 = vpack.c.bf16 %v1564, %v1563
        %v1622 = vpack.c.bf16 %v1566, %v1565
        %v1623 = vpack.c.bf16 %v1568, %v1567
        %v1624 = vpack.c.bf16 %v1570, %v1569
        %v1625 = vpack.c.bf16 %v1572, %v1571
        %v1626 = vpack.c.bf16 %v1574, %v1573
        %v1627 = vpack.c.bf16 %v1576, %v1575
        %v1628 = vpack.c.bf16 %v1578, %v1577
        %v1629 = vpack.c.bf16 %v1580, %v1579
        %v1630 = vpack.c.bf16 %v1582, %v1581
        %v1631 = vld [vmem:[#allocation5] sm:$0xff]
        %v1632 = vld [vmem:[#allocation5 + $0x8] sm:$0xf]
        %v1633 = vld [vmem:[#allocation5 + $0xc] sm:$0xff]
        %v1634 = vld [vmem:[#allocation5 + $0x14] sm:$0xf]
        %v1635 = vld [vmem:[#allocation5 + $0x18] sm:$0xff]
        %v1636 = vld [vmem:[#allocation5 + $0x20] sm:$0xf]
        %v1637 = vld [vmem:[#allocation5 + $0x24] sm:$0xff]
        %v1638 = vld [vmem:[#allocation5 + $0x2c] sm:$0xf]
        %v1639 = vld [vmem:[#allocation5 + $0x30] sm:$0xff]
        %v1640 = vld [vmem:[#allocation5 + $0x38] sm:$0xf]
        %v1641 = vld [vmem:[#allocation5 + $0x3c] sm:$0xff]
        %v1642 = vld [vmem:[#allocation5 + $0x44] sm:$0xf]
        %v1643 = vld [vmem:[#allocation5 + $0x48] sm:$0xff]
        %v1644 = vld [vmem:[#allocation5 + $0x50] sm:$0xf]
        %v1645 = vld [vmem:[#allocation5 + $0x54] sm:$0xff]
        %v1646 = vld [vmem:[#allocation5 + $0x5c] sm:$0xf]
        %v1647 = vld [vmem:[#allocation5 + $0x60] sm:$0xff]
        %v1648 = vld [vmem:[#allocation5 + $0x68] sm:$0xf]
        %v1649 = vld [vmem:[#allocation5 + $0x6c] sm:$0xff]
        %v1650 = vld [vmem:[#allocation5 + $0x74] sm:$0xf]
        %v1651 = vld [vmem:[#allocation5 + $0x78] sm:$0xff]
        %v1652 = vld [vmem:[#allocation5 + $0x80] sm:$0xf]
        %v1653 = vld [vmem:[#allocation5 + $0x84] sm:$0xff]
        %v1654 = vld [vmem:[#allocation5 + $0x8c] sm:$0xf]
        %v1655 = vld [vmem:[#allocation5 + $0x90] sm:$0xff]
        %v1656 = vld [vmem:[#allocation5 + $0x98] sm:$0xf]
        %v1657 = vld [vmem:[#allocation5 + $0x9c] sm:$0xff]
        %v1658 = vld [vmem:[#allocation5 + $0xa4] sm:$0xf]
        %v1659 = vld [vmem:[#allocation5 + $0xa8] sm:$0xff]
        %v1660 = vld [vmem:[#allocation5 + $0xb0] sm:$0xf]
        %v1661 = vld [vmem:[#allocation5 + $0xb4] sm:$0xff]
        %v1662 = vld [vmem:[#allocation5 + $0xbc] sm:$0xf]
        %v1695 = vunpack.c.l.b16 %v1631
        %v1696 = vunpack.c.h.b16 %v1631
        %v1697 = vunpack.c.l.b16 %v1632
        %v1698 = vunpack.c.l.b16 %v1633
        %v1699 = vunpack.c.h.b16 %v1633
        %v1700 = vunpack.c.l.b16 %v1634
        %v1701 = vunpack.c.l.b16 %v1635
        %v1702 = vunpack.c.h.b16 %v1635
        %v1703 = vunpack.c.l.b16 %v1636
        %v1704 = vunpack.c.l.b16 %v1637
        %v1705 = vunpack.c.h.b16 %v1637
        %v1706 = vunpack.c.l.b16 %v1638
        %v1707 = vunpack.c.l.b16 %v1639
        %v1708 = vunpack.c.h.b16 %v1639
        %v1709 = vunpack.c.l.b16 %v1640
        %v1710 = vunpack.c.l.b16 %v1641
        %v1711 = vunpack.c.h.b16 %v1641
        %v1712 = vunpack.c.l.b16 %v1642
        %v1713 = vunpack.c.l.b16 %v1643
        %v1714 = vunpack.c.h.b16 %v1643
        %v1715 = vunpack.c.l.b16 %v1644
        %v1716 = vunpack.c.l.b16 %v1645
        %v1717 = vunpack.c.h.b16 %v1645
        %v1718 = vunpack.c.l.b16 %v1646
        %v1719 = vunpack.c.l.b16 %v1647
        %v1720 = vunpack.c.h.b16 %v1647
        %v1721 = vunpack.c.l.b16 %v1648
        %v1722 = vunpack.c.l.b16 %v1649
        %v1723 = vunpack.c.h.b16 %v1649
        %v1724 = vunpack.c.l.b16 %v1650
        %v1725 = vunpack.c.l.b16 %v1651
        %v1726 = vunpack.c.h.b16 %v1651
        %v1727 = vunpack.c.l.b16 %v1652
        %v1728 = vunpack.c.l.b16 %v1653
        %v1729 = vunpack.c.h.b16 %v1653
        %v1730 = vunpack.c.l.b16 %v1654
        %v1731 = vunpack.c.l.b16 %v1655
        %v1732 = vunpack.c.h.b16 %v1655
        %v1733 = vunpack.c.l.b16 %v1656
        %v1734 = vunpack.c.l.b16 %v1657
        %v1735 = vunpack.c.h.b16 %v1657
        %v1736 = vunpack.c.l.b16 %v1658
        %v1737 = vunpack.c.l.b16 %v1659
        %v1738 = vunpack.c.h.b16 %v1659
        %v1739 = vunpack.c.l.b16 %v1660
        %v1740 = vunpack.c.l.b16 %v1661
        %v1741 = vunpack.c.h.b16 %v1661
        %v1742 = vunpack.c.l.b16 %v1662
        %v1743 = vpack.c.b16 %v1698, %v1695
        %v1744 = vpack.c.b16 %v1699, %v1696
        %v1745 = vpack.c.b16 %v1700, %v1697
        %v1746 = vpack.c.b16 %v1704, %v1701
        %v1747 = vpack.c.b16 %v1705, %v1702
        %v1748 = vpack.c.b16 %v1706, %v1703
        %v1749 = vpack.c.b16 %v1710, %v1707
        %v1750 = vpack.c.b16 %v1711, %v1708
        %v1751 = vpack.c.b16 %v1712, %v1709
        %v1752 = vpack.c.b16 %v1716, %v1713
        %v1753 = vpack.c.b16 %v1717, %v1714
        %v1754 = vpack.c.b16 %v1718, %v1715
        %v1755 = vpack.c.b16 %v1722, %v1719
        %v1756 = vpack.c.b16 %v1723, %v1720
        %v1757 = vpack.c.b16 %v1724, %v1721
        %v1758 = vpack.c.b16 %v1728, %v1725
        %v1759 = vpack.c.b16 %v1729, %v1726
        %v1760 = vpack.c.b16 %v1730, %v1727
        %v1761 = vpack.c.b16 %v1734, %v1731
        %v1762 = vpack.c.b16 %v1735, %v1732
        %v1763 = vpack.c.b16 %v1736, %v1733
        %v1764 = vpack.c.b16 %v1740, %v1737
        %v1765 = vpack.c.b16 %v1741, %v1738
        %v1766 = vpack.c.b16 %v1742, %v1739
        %1791 = vmatpush.bf16.msra.mxu0 %v1764
        %1792 = vmatpush.bf16.msra.mxu0 %v1761
        %1793 = vmatpush.bf16.msra.mxu0 %v1758
        %1794 = vmatpush.bf16.msra.mxu0 %v1755
        %1795 = vmatpush.bf16.msra.mxu0 %v1752
        %1796 = vmatpush.bf16.msra.mxu0 %v1749
        %1797 = vmatpush.bf16.msra.mxu0 %v1746
        %1798 = vmatpush.bf16.msra.mxu0 %v1743
        %1799 = vmatmul.bf16.gmra.mxu0 %v1615
        %v1800 = vpop.f32.mrf.mxu0
        %v1801 = vadd.f32 0.0, %v1800
        %v1802 = vpop.f32.mrf.mxu0
        %v1803 = vadd.f32 0.0, %v1802
        %1804 = vmatmul.bf16.gmra.mxu0 %v1616
        %v1805 = vpop.f32.mrf.mxu0
        %v1806 = vadd.f32 0.0, %v1805
        %v1807 = vpop.f32.mrf.mxu0
        %v1808 = vadd.f32 0.0, %v1807
        %1809 = vmatmul.bf16.gmra.mxu0 %v1617
        %v1810 = vpop.f32.mrf.mxu0
        %v1811 = vadd.f32 0.0, %v1810
        %v1812 = vpop.f32.mrf.mxu0
        %v1813 = vadd.f32 0.0, %v1812
        %1814 = vmatmul.bf16.gmra.mxu0 %v1618
        %v1815 = vpop.f32.mrf.mxu0
        %v1816 = vadd.f32 0.0, %v1815
        %v1817 = vpop.f32.mrf.mxu0
        %v1818 = vadd.f32 0.0, %v1817
        %1819 = vmatmul.bf16.gmra.mxu0 %v1619
        %v1820 = vpop.f32.mrf.mxu0
        %v1821 = vadd.f32 0.0, %v1820
        %v1822 = vpop.f32.mrf.mxu0
        %v1823 = vadd.f32 0.0, %v1822
        %1824 = vmatmul.bf16.gmra.mxu0 %v1620
        %v1825 = vpop.f32.mrf.mxu0
        %v1826 = vadd.f32 0.0, %v1825
        %v1827 = vpop.f32.mrf.mxu0
        %v1828 = vadd.f32 0.0, %v1827
        %1829 = vmatmul.bf16.gmra.mxu0 %v1621
        %v1830 = vpop.f32.mrf.mxu0
        %v1831 = vadd.f32 0.0, %v1830
        %v1832 = vpop.f32.mrf.mxu0
        %v1833 = vadd.f32 0.0, %v1832
        %1834 = vmatmul.bf16.gmra.mxu0 %v1622
        %v1835 = vpop.f32.mrf.mxu0
        %v1836 = vadd.f32 0.0, %v1835
        %v1837 = vpop.f32.mrf.mxu0
        %v1838 = vadd.f32 0.0, %v1837
        %1839 = vmatmul.bf16.gmra.mxu0 %v1623
        %v1840 = vpop.f32.mrf.mxu0
        %v1841 = vadd.f32 0.0, %v1840
        %v1842 = vpop.f32.mrf.mxu0
        %v1843 = vadd.f32 0.0, %v1842
        %1844 = vmatmul.bf16.gmra.mxu0 %v1624
        %v1845 = vpop.f32.mrf.mxu0
        %v1846 = vadd.f32 0.0, %v1845
        %v1847 = vpop.f32.mrf.mxu0
        %v1848 = vadd.f32 0.0, %v1847
        %1849 = vmatmul.bf16.gmra.mxu0 %v1625
        %v1850 = vpop.f32.mrf.mxu0
        %v1851 = vadd.f32 0.0, %v1850
        %v1852 = vpop.f32.mrf.mxu0
        %v1853 = vadd.f32 0.0, %v1852
        %1854 = vmatmul.bf16.gmra.mxu0 %v1626
        %v1855 = vpop.f32.mrf.mxu0
        %v1856 = vadd.f32 0.0, %v1855
        %v1857 = vpop.f32.mrf.mxu0
        %v1858 = vadd.f32 0.0, %v1857
        %1859 = vmatmul.bf16.gmra.mxu0 %v1627
        %v1860 = vpop.f32.mrf.mxu0
        %v1861 = vadd.f32 0.0, %v1860
        %v1862 = vpop.f32.mrf.mxu0
        %v1863 = vadd.f32 0.0, %v1862
        %1864 = vmatmul.bf16.gmra.mxu0 %v1628
        %v1865 = vpop.f32.mrf.mxu0
        %v1866 = vadd.f32 0.0, %v1865
        %v1867 = vpop.f32.mrf.mxu0
        %v1868 = vadd.f32 0.0, %v1867
        %1869 = vmatmul.bf16.gmra.mxu0 %v1629
        %v1870 = vpop.f32.mrf.mxu0
        %v1871 = vadd.f32 0.0, %v1870
        %v1872 = vpop.f32.mrf.mxu0
        %v1873 = vadd.f32 0.0, %v1872
        %1874 = vmatmul.bf16.gmra.mxu0 %v1630
        %v1875 = vpop.f32.mrf.mxu0
        %v1876 = vadd.f32 0.0, %v1875
        %v1877 = vpop.f32.mrf.mxu0
        %v1878 = vadd.f32 0.0, %v1877
        %1879 = vdwg.mxu0
        %1880 = vmatpush.bf16.msra.mxu0 %v1765
        %1881 = vmatpush.bf16.msra.mxu0 %v1762
        %1882 = vmatpush.bf16.msra.mxu0 %v1759
        %1883 = vmatpush.bf16.msra.mxu0 %v1756
        %1884 = vmatpush.bf16.msra.mxu0 %v1753
        %1885 = vmatpush.bf16.msra.mxu0 %v1750
        %1886 = vmatpush.bf16.msra.mxu0 %v1747
        %1887 = vmatpush.bf16.msra.mxu0 %v1744
        %1888 = vmatmul.bf16.gmra.mxu0 %v1615
        %v1889 = vpop.f32.mrf.mxu0
        %v1890 = vadd.f32 0.0, %v1889
        %v1891 = vpop.f32.mrf.mxu0
        %v1892 = vadd.f32 0.0, %v1891
        %1893 = vmatmul.bf16.gmra.mxu0 %v1616
        %v1894 = vpop.f32.mrf.mxu0
        %v1895 = vadd.f32 0.0, %v1894
        %v1896 = vpop.f32.mrf.mxu0
        %v1897 = vadd.f32 0.0, %v1896
        %1898 = vmatmul.bf16.gmra.mxu0 %v1617
        %v1899 = vpop.f32.mrf.mxu0
        %v1900 = vadd.f32 0.0, %v1899
        %v1901 = vpop.f32.mrf.mxu0
        %v1902 = vadd.f32 0.0, %v1901
        %1903 = vmatmul.bf16.gmra.mxu0 %v1618
        %v1904 = vpop.f32.mrf.mxu0
        %v1905 = vadd.f32 0.0, %v1904
        %v1906 = vpop.f32.mrf.mxu0
        %v1907 = vadd.f32 0.0, %v1906
        %1908 = vmatmul.bf16.gmra.mxu0 %v1619
        %v1909 = vpop.f32.mrf.mxu0
        %v1910 = vadd.f32 0.0, %v1909
        %v1911 = vpop.f32.mrf.mxu0
        %v1912 = vadd.f32 0.0, %v1911
        %1913 = vmatmul.bf16.gmra.mxu0 %v1620
        %v1914 = vpop.f32.mrf.mxu0
        %v1915 = vadd.f32 0.0, %v1914
        %v1916 = vpop.f32.mrf.mxu0
        %v1917 = vadd.f32 0.0, %v1916
        %1918 = vmatmul.bf16.gmra.mxu0 %v1621
        %v1919 = vpop.f32.mrf.mxu0
        %v1920 = vadd.f32 0.0, %v1919
        %v1921 = vpop.f32.mrf.mxu0
        %v1922 = vadd.f32 0.0, %v1921
        %1923 = vmatmul.bf16.gmra.mxu0 %v1622
        %v1924 = vpop.f32.mrf.mxu0
        %v1925 = vadd.f32 0.0, %v1924
        %v1926 = vpop.f32.mrf.mxu0
        %v1927 = vadd.f32 0.0, %v1926
        %1928 = vmatmul.bf16.gmra.mxu0 %v1623
        %v1929 = vpop.f32.mrf.mxu0
        %v1930 = vadd.f32 0.0, %v1929
        %v1931 = vpop.f32.mrf.mxu0
        %v1932 = vadd.f32 0.0, %v1931
        %1933 = vmatmul.bf16.gmra.mxu0 %v1624
        %v1934 = vpop.f32.mrf.mxu0
        %v1935 = vadd.f32 0.0, %v1934
        %v1936 = vpop.f32.mrf.mxu0
        %v1937 = vadd.f32 0.0, %v1936
        %1938 = vmatmul.bf16.gmra.mxu0 %v1625
        %v1939 = vpop.f32.mrf.mxu0
        %v1940 = vadd.f32 0.0, %v1939
        %v1941 = vpop.f32.mrf.mxu0
        %v1942 = vadd.f32 0.0, %v1941
        %1943 = vmatmul.bf16.gmra.mxu0 %v1626
        %v1944 = vpop.f32.mrf.mxu0
        %v1945 = vadd.f32 0.0, %v1944
        %v1946 = vpop.f32.mrf.mxu0
        %v1947 = vadd.f32 0.0, %v1946
        %1948 = vmatmul.bf16.gmra.mxu0 %v1627
        %v1949 = vpop.f32.mrf.mxu0
        %v1950 = vadd.f32 0.0, %v1949
        %v1951 = vpop.f32.mrf.mxu0
        %v1952 = vadd.f32 0.0, %v1951
        %1953 = vmatmul.bf16.gmra.mxu0 %v1628
        %v1954 = vpop.f32.mrf.mxu0
        %v1955 = vadd.f32 0.0, %v1954
        %v1956 = vpop.f32.mrf.mxu0
        %v1957 = vadd.f32 0.0, %v1956
        %1958 = vmatmul.bf16.gmra.mxu0 %v1629
        %v1959 = vpop.f32.mrf.mxu0
        %v1960 = vadd.f32 0.0, %v1959
        %v1961 = vpop.f32.mrf.mxu0
        %v1962 = vadd.f32 0.0, %v1961
        %1963 = vmatmul.bf16.gmra.mxu0 %v1630
        %v1964 = vpop.f32.mrf.mxu0
        %v1965 = vadd.f32 0.0, %v1964
        %v1966 = vpop.f32.mrf.mxu0
        %v1967 = vadd.f32 0.0, %v1966
        %1968 = vdwg.mxu0
        %1969 = vmatpush.bf16.msra.mxu0 %v1766
        %1970 = vmatpush.bf16.msra.mxu0 %v1763
        %1971 = vmatpush.bf16.msra.mxu0 %v1760
        %1972 = vmatpush.bf16.msra.mxu0 %v1757
        %1973 = vmatpush.bf16.msra.mxu0 %v1754
        %1974 = vmatpush.bf16.msra.mxu0 %v1751
        %1975 = vmatpush.bf16.msra.mxu0 %v1748
        %1976 = vmatpush.bf16.msra.mxu0 %v1745
        %1977 = vmatmul.bf16.gmra.mxu0 %v1615
        %v1978 = vpop.f32.mrf.mxu0
        %v1979 = vadd.f32 0.0, %v1978
        %v1980 = vpop.f32.mrf.mxu0
        %v1981 = vadd.f32 0.0, %v1980
        %1982 = vmatmul.bf16.gmra.mxu0 %v1616
        %v1983 = vpop.f32.mrf.mxu0
        %v1984 = vadd.f32 0.0, %v1983
        %v1985 = vpop.f32.mrf.mxu0
        %v1986 = vadd.f32 0.0, %v1985
        %1987 = vmatmul.bf16.gmra.mxu0 %v1617
        %v1988 = vpop.f32.mrf.mxu0
        %v1989 = vadd.f32 0.0, %v1988
        %v1990 = vpop.f32.mrf.mxu0
        %v1991 = vadd.f32 0.0, %v1990
        %1992 = vmatmul.bf16.gmra.mxu0 %v1618
        %v1993 = vpop.f32.mrf.mxu0
        %v1994 = vadd.f32 0.0, %v1993
        %v1995 = vpop.f32.mrf.mxu0
        %v1996 = vadd.f32 0.0, %v1995
        %1997 = vmatmul.bf16.gmra.mxu0 %v1619
        %v1998 = vpop.f32.mrf.mxu0
        %v1999 = vadd.f32 0.0, %v1998
        %v2000 = vpop.f32.mrf.mxu0
        %v2001 = vadd.f32 0.0, %v2000
        %2002 = vmatmul.bf16.gmra.mxu0 %v1620
        %v2003 = vpop.f32.mrf.mxu0
        %v2004 = vadd.f32 0.0, %v2003
        %v2005 = vpop.f32.mrf.mxu0
        %v2006 = vadd.f32 0.0, %v2005
        %2007 = vmatmul.bf16.gmra.mxu0 %v1621
        %v2008 = vpop.f32.mrf.mxu0
        %v2009 = vadd.f32 0.0, %v2008
        %v2010 = vpop.f32.mrf.mxu0
        %v2011 = vadd.f32 0.0, %v2010
        %2012 = vmatmul.bf16.gmra.mxu0 %v1622
        %v2013 = vpop.f32.mrf.mxu0
        %v2014 = vadd.f32 0.0, %v2013
        %v2015 = vpop.f32.mrf.mxu0
        %v2016 = vadd.f32 0.0, %v2015
        %2017 = vmatmul.bf16.gmra.mxu0 %v1623
        %v2018 = vpop.f32.mrf.mxu0
        %v2019 = vadd.f32 0.0, %v2018
        %v2020 = vpop.f32.mrf.mxu0
        %v2021 = vadd.f32 0.0, %v2020
        %2022 = vmatmul.bf16.gmra.mxu0 %v1624
        %v2023 = vpop.f32.mrf.mxu0
        %v2024 = vadd.f32 0.0, %v2023
        %v2025 = vpop.f32.mrf.mxu0
        %v2026 = vadd.f32 0.0, %v2025
        %2027 = vmatmul.bf16.gmra.mxu0 %v1625
        %v2028 = vpop.f32.mrf.mxu0
        %v2029 = vadd.f32 0.0, %v2028
        %v2030 = vpop.f32.mrf.mxu0
        %v2031 = vadd.f32 0.0, %v2030
        %2032 = vmatmul.bf16.gmra.mxu0 %v1626
        %v2033 = vpop.f32.mrf.mxu0
        %v2034 = vadd.f32 0.0, %v2033
        %v2035 = vpop.f32.mrf.mxu0
        %v2036 = vadd.f32 0.0, %v2035
        %2037 = vmatmul.bf16.gmra.mxu0 %v1627
        %v2038 = vpop.f32.mrf.mxu0
        %v2039 = vadd.f32 0.0, %v2038
        %v2040 = vpop.f32.mrf.mxu0
        %v2041 = vadd.f32 0.0, %v2040
        %2042 = vmatmul.bf16.gmra.mxu0 %v1628
        %v2043 = vpop.f32.mrf.mxu0
        %v2044 = vadd.f32 0.0, %v2043
        %v2045 = vpop.f32.mrf.mxu0
        %v2046 = vadd.f32 0.0, %v2045
        %2047 = vmatmul.bf16.gmra.mxu0 %v1629
        %v2048 = vpop.f32.mrf.mxu0
        %v2049 = vadd.f32 0.0, %v2048
        %v2050 = vpop.f32.mrf.mxu0
        %v2051 = vadd.f32 0.0, %v2050
        %2052 = vmatmul.bf16.gmra.mxu0 %v1630
        %v2053 = vpop.f32.mrf.mxu0
        %v2054 = vadd.f32 0.0, %v2053
        %v2055 = vpop.f32.mrf.mxu0
        %v2056 = vadd.f32 0.0, %v2055
        %2057 = vdwg.mxu0
        %v2058 = vmul.f32 %v1801, %v1890
        %v2059 = vmul.f32 %v1803, %v1892
        %v2060 = vmul.f32 %v1806, %v1895
        %v2061 = vmul.f32 %v1808, %v1897
        %v2062 = vmul.f32 %v1811, %v1900
        %v2063 = vmul.f32 %v1813, %v1902
        %v2064 = vmul.f32 %v1816, %v1905
        %v2065 = vmul.f32 %v1818, %v1907
        %v2066 = vmul.f32 %v1821, %v1910
        %v2067 = vmul.f32 %v1823, %v1912
        %v2068 = vmul.f32 %v1826, %v1915
        %v2069 = vmul.f32 %v1828, %v1917
        %v2070 = vmul.f32 %v1831, %v1920
        %v2071 = vmul.f32 %v1833, %v1922
        %v2072 = vmul.f32 %v1836, %v1925
        %v2073 = vmul.f32 %v1838, %v1927
        %v2074 = vmul.f32 %v1841, %v1930
        %v2075 = vmul.f32 %v1843, %v1932
        %v2076 = vmul.f32 %v1846, %v1935
        %v2077 = vmul.f32 %v1848, %v1937
        %v2078 = vmul.f32 %v1851, %v1940
        %v2079 = vmul.f32 %v1853, %v1942
        %v2080 = vmul.f32 %v1856, %v1945
        %v2081 = vmul.f32 %v1858, %v1947
        %v2082 = vmul.f32 %v1861, %v1950
        %v2083 = vmul.f32 %v1863, %v1952
        %v2084 = vmul.f32 %v1866, %v1955
        %v2085 = vmul.f32 %v1868, %v1957
        %v2086 = vmul.f32 %v1871, %v1960
        %v2087 = vmul.f32 %v1873, %v1962
        %v2088 = vmul.f32 %v1876, %v1965
        %v2089 = vmul.f32 %v1878, %v1967
        %v2090 = vmul.f32 %v2058, %v1979
        %v2091 = vmul.f32 %v2059, %v1981
        %v2092 = vmul.f32 %v2060, %v1984
        %v2093 = vmul.f32 %v2061, %v1986
        %v2094 = vmul.f32 %v2062, %v1989
        %v2095 = vmul.f32 %v2063, %v1991
        %v2096 = vmul.f32 %v2064, %v1994
        %v2097 = vmul.f32 %v2065, %v1996
        %v2098 = vmul.f32 %v2066, %v1999
        %v2099 = vmul.f32 %v2067, %v2001
        %v2100 = vmul.f32 %v2068, %v2004
        %v2101 = vmul.f32 %v2069, %v2006
        %v2102 = vmul.f32 %v2070, %v2009
        %v2103 = vmul.f32 %v2071, %v2011
        %v2104 = vmul.f32 %v2072, %v2014
        %v2105 = vmul.f32 %v2073, %v2016
        %v2106 = vmul.f32 %v2074, %v2019
        %v2107 = vmul.f32 %v2075, %v2021
        %v2108 = vmul.f32 %v2076, %v2024
        %v2109 = vmul.f32 %v2077, %v2026
        %v2110 = vmul.f32 %v2078, %v2029
        %v2111 = vmul.f32 %v2079, %v2031
        %v2112 = vmul.f32 %v2080, %v2034
        %v2113 = vmul.f32 %v2081, %v2036
        %v2114 = vmul.f32 %v2082, %v2039
        %v2115 = vmul.f32 %v2083, %v2041
        %v2116 = vmul.f32 %v2084, %v2044
        %v2117 = vmul.f32 %v2085, %v2046
        %v2118 = vmul.f32 %v2086, %v2049
        %v2119 = vmul.f32 %v2087, %v2051
        %v2120 = vmul.f32 %v2088, %v2054
        %v2121 = vmul.f32 %v2089, %v2056
        %2122 = vst [vmem:[%s319] sm:$0xff] %v2090
        %2123 = vst [vmem:[%s319 + $0x8] sm:$0xff] %v2091
        %2124 = vst [vmem:[%s319 + $0x10] sm:$0xff] %v2092
        %2125 = vst [vmem:[%s319 + $0x18] sm:$0xff] %v2093
        %2126 = vst [vmem:[%s319 + $0x20] sm:$0xff] %v2094
        %2127 = vst [vmem:[%s319 + $0x28] sm:$0xff] %v2095
        %2128 = vst [vmem:[%s319 + $0x30] sm:$0xff] %v2096
        %2129 = vst [vmem:[%s319 + $0x38] sm:$0xff] %v2097
        %2130 = vst [vmem:[%s319 + $0x40] sm:$0xff] %v2098
        %2131 = vst [vmem:[%s319 + $0x48] sm:$0xff] %v2099
        %2132 = vst [vmem:[%s319 + $0x50] sm:$0xff] %v2100
        %2133 = vst [vmem:[%s319 + $0x58] sm:$0xff] %v2101
        %2134 = vst [vmem:[%s319 + $0x60] sm:$0xff] %v2102
        %2135 = vst [vmem:[%s319 + $0x68] sm:$0xff] %v2103
        %2136 = vst [vmem:[%s319 + $0x70] sm:$0xff] %v2104
        %2137 = vst [vmem:[%s319 + $0x78] sm:$0xff] %v2105
        %2138 = vst [vmem:[%s319 + $0x80] sm:$0xff] %v2106
        %2139 = vst [vmem:[%s319 + $0x88] sm:$0xff] %v2107
        %2140 = vst [vmem:[%s319 + $0x90] sm:$0xff] %v2108
        %2141 = vst [vmem:[%s319 + $0x98] sm:$0xff] %v2109
        %2142 = vst [vmem:[%s319 + $0xa0] sm:$0xff] %v2110
        %2143 = vst [vmem:[%s319 + $0xa8] sm:$0xff] %v2111
        %2144 = vst [vmem:[%s319 + $0xb0] sm:$0xff] %v2112
        %2145 = vst [vmem:[%s319 + $0xb8] sm:$0xff] %v2113
        %2146 = vst [vmem:[%s319 + $0xc0] sm:$0xff] %v2114
        %2147 = vst [vmem:[%s319 + $0xc8] sm:$0xff] %v2115
        %2148 = vst [vmem:[%s319 + $0xd0] sm:$0xff] %v2116
        %2149 = vst [vmem:[%s319 + $0xd8] sm:$0xff] %v2117
        %2150 = vst [vmem:[%s319 + $0xe0] sm:$0xff] %v2118
        %2151 = vst [vmem:[%s319 + $0xe8] sm:$0xff] %v2119
        %2152 = vst [vmem:[%s319 + $0xf0] sm:$0xff] %v2120
        %2153 = vst [vmem:[%s319 + $0xf8] sm:$0xff] %v2121
        %s2154 = sand.u32 %s168, 1
        %s2155 = scalar_lea.sflag [#allocation4], %s2154
        %s2156 = sand.u32 %s168, 1
        %s2157 = smul.addr %s2156, 256
        %s2158 = scalar_lea.vmem [#allocation7], %s2157
        %s2159 = sand.u32 %s194, 1
        %s2160 = scalar_lea.sflag [#allocation9], %s2159
        %s2161 = sand.u32 %s194, 1
        %s2162 = smul.addr %s2161, 256
        %s2163 = scalar_lea.vmem [#allocation8], %s2162
        // Predicated region
        $region53: #{tpu_custom_call.1} parent=43 // pred_check
          %p2164 = pneg %p178
        $region54: #{tpu_custom_call.1} parent=43 // pred_check_branch
          %2166 = sbr.rel (%p2164) target = $region56
        $region55: #{tpu_custom_call.1} parent=43 // pred_region
          %s2167 = smul.u32 32, %s29
          %2169 = vsyncadd %s2155, 0
          %s2170 = smul.addr %s2167, 8
          %s2171 = scalar_lea.hbm %s6, %s2170
          %s2172 = sshll.u32 %s2158, 4
          %s2173 = int_to_ptr.vmem [resolvable:$true] %s2172
          %s2174 = sshll.u32 %s2171, 4
          %s2175 = int_to_ptr.hbm [resolvable:$true] %s2174
          %2180 = dma.vmem_to_hbm [thread:$0]  %s2173, 4096, %s2175, %s2155, 128, 128, 8
        $region56: #{tpu_custom_call.1} parent=43 // pred_fallthru
          _
        // Predicated region
        $region57: #{tpu_custom_call.1} parent=43 // pred_check
          %p2181 = pneg %p204
        $region58: #{tpu_custom_call.1} parent=43 // pred_check_branch
          %2183 = sbr.rel (%p2181) target = $region60
        $region59: #{tpu_custom_call.1} parent=43 // pred_region
          %s2184 = smul.u32 32, %s29
          %2186 = vsyncadd %s2160, 0
          %s2187 = smul.addr %s2184, 8
          %s2188 = scalar_lea.hbm %s7, %s2187
          %s2189 = sshll.u32 %s2163, 4
          %s2190 = int_to_ptr.vmem [resolvable:$true] %s2189
          %s2191 = sshll.u32 %s2188, 4
          %s2192 = int_to_ptr.hbm [resolvable:$true] %s2191
          %2197 = dma.vmem_to_hbm [thread:$0]  %s2190, 4096, %s2192, %s2160, 128, 128, 8
        $region60: #{tpu_custom_call.1} parent=43 // pred_fallthru
          _
      $region44: #{tpu_custom_call.1} parent=5 // pred_fallthru
        _
      %p2198 = scmp.le.s32.totalorder 2, %s24
      // Predicated region
      $region61: #{tpu_custom_call.1} parent=5 // pred_check
        %p2199 = pneg %p2198
      $region62: #{tpu_custom_call.1} parent=5 // pred_check_branch
        %2201 = sbr.rel (%p2199) target = $region64
      $region63: #{tpu_custom_call.1} parent=5 // pred_region
        %s2202 = ssub.s32 %s24, 2
        // Predicated region
        $region65: #{tpu_custom_call.1} parent=63 // pred_check
          %p2203 = pneg %p184
        $region66: #{tpu_custom_call.1} parent=63 // pred_check_branch
          %2205 = sbr.rel (%p2203) target = $region68
        $region67: #{tpu_custom_call.1} parent=63 // pred_region
          %s2206 = sand.u32 %s169, 1
          %s2207 = scalar_lea.sflag [#allocation4], %s2206
          %s2208 = sand.u32 %s169, 1
          %s2209 = smul.addr %s2208, 256
          %s2210 = scalar_lea.vmem [#allocation7], %s2209
          %2212 = dma.done %s2207, 4096
        $region68: #{tpu_custom_call.1} parent=63 // pred_fallthru
          _
        // Predicated region
        $region69: #{tpu_custom_call.1} parent=63 // pred_check
          %p2213 = pneg %p210
        $region70: #{tpu_custom_call.1} parent=63 // pred_check_branch
          %2215 = sbr.rel (%p2213) target = $region72
        $region71: #{tpu_custom_call.1} parent=63 // pred_region
          %s2216 = sand.u32 %s195, 1
          %s2217 = scalar_lea.sflag [#allocation9], %s2216
          %s2218 = sand.u32 %s195, 1
          %s2219 = smul.addr %s2218, 256
          %s2220 = scalar_lea.vmem [#allocation8], %s2219
          %2222 = dma.done %s2217, 4096
        $region72: #{tpu_custom_call.1} parent=63 // pred_fallthru
          _
      $region64: #{tpu_custom_call.1} parent=5 // pred_fallthru
        _
    $region6: #{tpu_custom_call.1} parent=1 // loop_footer
      %s28 = sadd.s32 1, %s24
    $region7: #{tpu_custom_call.1} parent=1 // loop_footer_branch
      %23 = sbr.rel target = $region3
    $region8: #{tpu_custom_call.1} parent=1 // loop_exit
      _
    %2223 = vsyncpa [#allocation3], 1
    %s2224 = scalar_lea.sflag [#allocation3], 1
    %2225 = vsyncpa %s2224, 1
    %2226 = vsyncpa [#allocation6], 1
    %2227 = vsyncpa [#allocation4], 1
    %s2228 = scalar_lea.sflag [#allocation4], 1
    %2229 = vsyncpa %s2228, 1
    %2230 = vsyncpa [#allocation9], 1
    %s2231 = scalar_lea.sflag [#allocation9], 1
    %2232 = vsyncpa %s2231, 1

</llo_original>
